<compile_context>
chip_gen: v7x
topology: tpu7x:2x2x1
jax: 0.10.0
libtpu: 0.0.40
codegen_flags: <defaults>
</compile_context>

<pallas_src>
import functools

import jax
import jax.numpy as jnp
from jax.experimental import pallas as pl
from jax.experimental.pallas import tpu as pltpu

EPS = 1e-5  # torch.nn.InstanceNorm2d default


# ------------------------------- Pallas kernels ------------------------------- #

def _down_block_kernel(z_ref, w_ref, g_ref, b_ref, o_ref, *, oh, ow, use_norm):
    """Fused Conv2d(4,2,1) + InstanceNorm + LeakyReLU(0.2) for one sample.

    z_ref: (1, OH+1, OW+1, 4*Cin) bf16  space-to-depth'd, padded input
    w_ref: (4, 4*Cin, Cout)       bf16  packed weights, tap index = qh*2 + qw
    g_ref, b_ref: (1, Cout)       f32   InstanceNorm affine params
    o_ref: (1, OH*OW, Cout)       f32
    """
    z = z_ref[0]
    k4 = z.shape[-1]
    m = oh * ow
    cout = o_ref.shape[-1]

    acc = jnp.zeros((m, cout), jnp.float32)
    for qh in range(2):
        for qw in range(2):
            tap = z[qh:qh + oh, qw:qw + ow, :].reshape(m, k4)          # unit-stride slice
            acc = acc + jnp.dot(tap, w_ref[qh * 2 + qw],
                                preferred_element_type=jnp.float32)

    if use_norm:
        mean = jnp.mean(acc, axis=0, keepdims=True)
        var = jnp.mean(jnp.square(acc - mean), axis=0, keepdims=True)  # biased, as torch
        acc = (acc - mean) * jax.lax.rsqrt(var + EPS)
        acc = acc * g_ref[...] + b_ref[...]

    acc = jnp.where(acc > 0, acc, 0.2 * acc)                           # LeakyReLU(0.2)
    o_ref[0] = acc


def _up_block_kernel(x_ref, w_ref, g_ref, b_ref, o_ref, *, h, w, use_norm):
    """Fused ConvTranspose2d(4,2,1) + InstanceNorm + ReLU for one sample.

    x_ref: (1, H+2, W+2, Cin)  bf16  padded channels-last input
    w_ref: (16, Cin, Cout)     bf16  packed weights, index = ((a*2+b)*2+qh)*2+qw
    g_ref, b_ref: (1, Cout)    f32
    o_ref: (1, 4, H*W, Cout)   f32   output parity planes (a*2 + b)
    """
    x = x_ref[0]
    cin = x.shape[-1]
    m = h * w
    cout = o_ref.shape[-1]

    planes = []
    for a in range(2):
        for b in range(2):
            acc = jnp.zeros((m, cout), jnp.float32)
            for qh in range(2):
                for qw in range(2):
                    tap = x[a + qh:a + qh + h, b + qw:b + qw + w, :].reshape(m, cin)
                    acc = acc + jnp.dot(tap, w_ref[((a * 2 + b) * 2 + qh) * 2 + qw],
                                        preferred_element_type=jnp.float32)
            planes.append(acc)

    if use_norm:
        total = 4.0 * m
        mean = sum(jnp.sum(p, axis=0, keepdims=True) for p in planes) / total
        var = sum(jnp.sum(jnp.square(p - mean), axis=0, keepdims=True)
                  for p in planes) / total
        inv = jax.lax.rsqrt(var + EPS)
        planes = [(p - mean) * inv * g_ref[...] + b_ref[...] for p in planes]

    planes = [jnp.maximum(p, 0.0) for p in planes]                     # ReLU
    # TODO(synk): Dropout(0.5) (use_dropout=True) is identity at inference; omitted.

    for a in range(2):
        for b in range(2):
            o_ref[0, a * 2 + b] = planes[a * 2 + b]


# --------------------- one-time weight packing (hoisted) ---------------------- #

def pack_down_weight(w):
    """(Cout, Cin, 4, 4) f32 torch Conv2d weight -> (4, 4*Cin, Cout) bf16."""
    cout, cin = w.shape[0], w.shape[1]
    w6 = w.reshape(cout, cin, 2, 2, 2, 2)          # (co, ci, qh, c, qw, d); kh=2qh+c, kw=2qw+d
    w6 = w6.transpose(2, 4, 3, 5, 1, 0)            # (qh, qw, c, d, ci, co)
    return w6.reshape(4, 4 * cin, cout).astype(jnp.bfloat16)


def pack_up_weight(w):
    """(Cin, Cout, 4, 4) f32 torch ConvTranspose2d weight -> (16, Cin, Cout) bf16."""
    cin, cout = w.shape[0], w.shape[1]
    taps = []
    for a in range(2):
        for b in range(2):
            for qh in range(2):
                for qw in range(2):
                    taps.append(w[:, :, 3 - a - 2 * qh, 3 - b - 2 * qw])
    return jnp.stack(taps, axis=0).reshape(16, cin, cout).astype(jnp.bfloat16)


# -------------------------------- block wrappers ------------------------------- #

def unet_block_down(x, w_packed, gamma, beta, *, use_norm=True):
    """x: (N, Cin, H, W) f32 NCHW -> (N, Cout, H//2, W//2) f32."""
    n, cin, hh, ww = x.shape
    oh, ow = hh // 2, ww // 2
    hq, wq = oh + 1, ow + 1
    cout = w_packed.shape[-1]

    # O(input) host-side relayout: pad + space-to-depth + bf16 cast (no HBM patch blowup).
    xp = jnp.pad(x.astype(jnp.bfloat16), ((0, 0), (0, 0), (1, 1), (1, 1)))
    z = xp.reshape(n, cin, hq, 2, wq, 2).transpose(0, 2, 4, 3, 5, 1)
    z = z.reshape(n, hq, wq, 4 * cin)

    g = gamma.reshape(1, cout).astype(jnp.float32)
    b = beta.reshape(1, cout).astype(jnp.float32)

    kern = functools.partial(_down_block_kernel, oh=oh, ow=ow, use_norm=use_norm)
    y = pl.pallas_call(
        kern,
        out_shape=jax.ShapeDtypeStruct((n, oh * ow, cout), jnp.float32),
        grid=(n,),
        in_specs=[
            pl.BlockSpec((1, hq, wq, 4 * cin), lambda i: (i, 0, 0, 0)),
            pl.BlockSpec((4, 4 * cin, cout), lambda i: (0, 0, 0)),
            pl.BlockSpec((1, cout), lambda i: (0, 0)),
            pl.BlockSpec((1, cout), lambda i: (0, 0)),
        ],
        out_specs=pl.BlockSpec((1, oh * ow, cout), lambda i: (i, 0, 0)),
        compiler_params=pltpu.CompilerParams(dimension_semantics=("parallel",)),
    )(z, w_packed, g, b)

    return y.reshape(n, oh, ow, cout).transpose(0, 3, 1, 2)


def unet_block_up(x, w_packed, gamma, beta, *, use_norm=True):
    """x: (N, Cin, H, W) f32 NCHW -> (N, Cout, 2H, 2W) f32."""
    n, cin, hh, ww = x.shape
    cout = w_packed.shape[-1]

    xq = jnp.pad(x.astype(jnp.bfloat16), ((0, 0), (0, 0), (1, 1), (1, 1)))
    xq = xq.transpose(0, 2, 3, 1)                  # channels-last (N, H+2, W+2, Cin)

    g = gamma.reshape(1, cout).astype(jnp.float32)
    b = beta.reshape(1, cout).astype(jnp.float32)

    kern = functools.partial(_up_block_kernel, h=hh, w=ww, use_norm=use_norm)
    y = pl.pallas_call(
        kern,
        out_shape=jax.ShapeDtypeStruct((n, 4, hh * ww, cout), jnp.float32),
        grid=(n,),
        in_specs=[
            pl.BlockSpec((1, hh + 2, ww + 2, cin), lambda i: (i, 0, 0, 0)),
            pl.BlockSpec((16, cin, cout), lambda i: (0, 0, 0)),
            pl.BlockSpec((1, cout), lambda i: (0, 0)),
            pl.BlockSpec((1, cout), lambda i: (0, 0)),
        ],
        out_specs=pl.BlockSpec((1, 4, hh * ww, cout), lambda i: (i, 0, 0, 0)),
        compiler_params=pltpu.CompilerParams(dimension_semantics=("parallel",)),
    )(xq, w_packed, g, b)

    # Depth-to-space of the parity planes (O(output) layout plumbing, NCHW result).
    y = y.reshape(n, 2, 2, hh, ww, cout)            # (n, a, b, i, j, co)
    y = y.transpose(0, 5, 3, 1, 4, 2)               # (n, co, i, a, j, b)
    return y.reshape(n, cout, 2 * hh, 2 * ww)


# --------------------------- pure-JAX reference (check) ------------------------ #

def _ref_norm_act(y, gamma, beta, use_norm, leaky):
    if use_norm:
        mean = jnp.mean(y, axis=(2, 3), keepdims=True)
        var = jnp.mean(jnp.square(y - mean), axis=(2, 3), keepdims=True)
        y = (y - mean) / jnp.sqrt(var + EPS)
        y = y * gamma.reshape(1, -1, 1, 1) + beta.reshape(1, -1, 1, 1)
    return jnp.where(y > 0, y, 0.2 * y) if leaky else jnp.maximum(y, 0.0)


def _ref_down(x, w, gamma, beta, use_norm):
    y = jax.lax.conv_general_dilated(
        x, w, window_strides=(2, 2), padding=((1, 1), (1, 1)),
        dimension_numbers=("NCHW", "OIHW", "NCHW"))
    return _ref_norm_act(y, gamma, beta, use_norm, leaky=True)


def _ref_up(x, w, gamma, beta, use_norm):
    wc = jnp.flip(jnp.transpose(w, (1, 0, 2, 3)), axis=(2, 3))
    y = jax.lax.conv_general_dilated(
        x, wc, window_strides=(1, 1), padding=((2, 2), (2, 2)),
        lhs_dilation=(2, 2), dimension_numbers=("NCHW", "OIHW", "NCHW"))
    return _ref_norm_act(y, gamma, beta, use_norm, leaky=False)


# ------------------------------------ main ------------------------------------- #

if __name__ == "__main__":
    key = jax.random.PRNGKey(0)
    k1, k2, k3, k4, k5, k6, k7, k8 = jax.random.split(key, 8)

    # ---- down block: Conv2d(16 -> 32, 4, 2, 1) + InstanceNorm + LeakyReLU(0.2) ----
    N, CIN_D, COUT_D, H, W = 2, 16, 32, 32, 32
    x_d = jax.random.normal(k1, (N, CIN_D, H, W), jnp.float32)
    w_d = 0.05 * jax.random.normal(k2, (COUT_D, CIN_D, 4, 4), jnp.float32)
    g_d = 1.0 + 0.1 * jax.random.normal(k3, (COUT_D,), jnp.float32)
    b_d = 0.1 * jax.random.normal(k4, (COUT_D,), jnp.float32)
    wp_d = pack_down_weight(w_d)                    # one-time packing (hoisted)

    y_d = jax.block_until_ready(unet_block_down(x_d, wp_d, g_d, b_d, use_norm=True))
    assert y_d.shape == (N, COUT_D, H // 2, W // 2) and y_d.dtype == jnp.float32
    err_d = float(jnp.max(jnp.abs(y_d - _ref_down(x_d, w_d, g_d, b_d, True))))

    # ---- up block: ConvTranspose2d(64 -> 32, 4, 2, 1) + InstanceNorm + ReLU -------
    CIN_U, COUT_U, HU, WU = 64, 32, 16, 16
    x_u = jax.random.normal(k5, (N, CIN_U, HU, WU), jnp.float32)
    w_u = 0.05 * jax.random.normal(k6, (CIN_U, COUT_U, 4, 4), jnp.float32)
    g_u = 1.0 + 0.1 * jax.random.normal(k7, (COUT_U,), jnp.float32)
    b_u = 0.1 * jax.random.normal(k8, (COUT_U,), jnp.float32)
    wp_u = pack_up_weight(w_u)                      # one-time packing (hoisted)

    y_u = jax.block_until_ready(unet_block_up(x_u, wp_u, g_u, b_u, use_norm=True))
    assert y_u.shape == (N, COUT_U, 2 * HU, 2 * WU) and y_u.dtype == jnp.float32
    err_u = float(jnp.max(jnp.abs(y_u - _ref_up(x_u, w_u, g_u, b_u, True))))

    # bf16 MXU inputs with f32 accumulation -> small numerical noise only.
    assert err_d < 1e-1 and err_u < 1e-1, (err_d, err_u)
    print("KERNEL_OK")
</pallas_src>

<mosaic_0001>
module attributes {stable_mosaic.version = 11 : i64} {
  func.func @_down_block_kernel(%arg0: i32, %arg1: memref<1x17x17x64xbf16, #tpu.memory_space<vmem>>, %arg2: memref<4x64x32xbf16, #tpu.memory_space<vmem>>, %arg3: memref<1x32xf32, #tpu.memory_space<vmem>>, %arg4: memref<1x32xf32, #tpu.memory_space<vmem>>, %arg5: memref<1x256x32xf32, #tpu.memory_space<vmem>>) attributes {dimension_semantics = [#tpu.dimension_semantics<parallel>], iteration_bounds = array<i64: 2>, scalar_prefetch = 0 : i64, scratch_operands = 0 : i64, tpu.core_type = #tpu.core_type<tc>, window_params = [{transform_indices = @transform_0, window_bounds = array<i64: 1, 17, 17, 64>}, {pipeline_mode = #tpu.pipeline_mode<synchronous>, transform_indices = @transform_1, window_bounds = array<i64: 4, 64, 32>}, {pipeline_mode = #tpu.pipeline_mode<synchronous>, transform_indices = @transform_2, window_bounds = array<i64: 1, 32>}, {pipeline_mode = #tpu.pipeline_mode<synchronous>, transform_indices = @transform_3, window_bounds = array<i64: 1, 32>}, {transform_indices = @transform_4, window_bounds = array<i64: 1, 256, 32>}]} {
    %c0 = arith.constant 0 : index
    %c0_0 = arith.constant 0 : index
    %c0_1 = arith.constant 0 : index
    %c0_2 = arith.constant 0 : index
    %0 = vector.load %arg1[%c0, %c0_0, %c0_1, %c0_2] : memref<1x17x17x64xbf16, #tpu.memory_space<vmem>>, vector<1x17x17x64xbf16>
    %1 = vector.shape_cast %0 : vector<1x17x17x64xbf16> to vector<17x17x64xbf16>
    %cst = arith.constant 0.000000e+00 : f32
    %2 = vector.broadcast %cst : f32 to vector<256x32xf32>
    %3 = vector.extract_strided_slice %1 {offsets = [0, 0, 0], sizes = [16, 16, 64], strides = [1, 1, 1]} : vector<17x17x64xbf16> to vector<16x16x64xbf16>
    %4 = vector.shape_cast %3 : vector<16x16x64xbf16> to vector<256x64xbf16>
    %c0_3 = arith.constant 0 : index
    %c0_4 = arith.constant 0 : index
    %c0_5 = arith.constant 0 : index
    %5 = vector.load %arg2[%c0_3, %c0_4, %c0_5] : memref<4x64x32xbf16, #tpu.memory_space<vmem>>, vector<1x64x32xbf16>
    %6 = vector.shape_cast %5 : vector<1x64x32xbf16> to vector<64x32xbf16>
    %cst_6 = arith.constant dense<0.000000e+00> : vector<256x32xf32>
    %7 = tpu.matmul %4, %6, %cst_6 {dimension_numbers = #tpu.dot_dimension_numbers<[1], [0], [0], [1], [0, 0, 1, 1], [], []>} : vector<256x64xbf16>, vector<64x32xbf16>, vector<256x32xf32> -> vector<256x32xf32>
    %8 = arith.addf %2, %7 : vector<256x32xf32>
    %9 = vector.extract_strided_slice %1 {offsets = [0, 1, 0], sizes = [16, 16, 64], strides = [1, 1, 1]} : vector<17x17x64xbf16> to vector<16x16x64xbf16>
    %10 = vector.shape_cast %9 : vector<16x16x64xbf16> to vector<256x64xbf16>
    %c1 = arith.constant 1 : index
    %c0_7 = arith.constant 0 : index
    %c0_8 = arith.constant 0 : index
    %11 = vector.load %arg2[%c1, %c0_7, %c0_8] : memref<4x64x32xbf16, #tpu.memory_space<vmem>>, vector<1x64x32xbf16>
    %12 = vector.shape_cast %11 : vector<1x64x32xbf16> to vector<64x32xbf16>
    %cst_9 = arith.constant dense<0.000000e+00> : vector<256x32xf32>
    %13 = tpu.matmul %10, %12, %cst_9 {dimension_numbers = #tpu.dot_dimension_numbers<[1], [0], [0], [1], [0, 0, 1, 1], [], []>} : vector<256x64xbf16>, vector<64x32xbf16>, vector<256x32xf32> -> vector<256x32xf32>
    %14 = arith.addf %8, %13 : vector<256x32xf32>
    %15 = vector.extract_strided_slice %1 {offsets = [1, 0, 0], sizes = [16, 16, 64], strides = [1, 1, 1]} : vector<17x17x64xbf16> to vector<16x16x64xbf16>
    %16 = vector.shape_cast %15 : vector<16x16x64xbf16> to vector<256x64xbf16>
    %c2 = arith.constant 2 : index
    %c0_10 = arith.constant 0 : index
    %c0_11 = arith.constant 0 : index
    %17 = vector.load %arg2[%c2, %c0_10, %c0_11] : memref<4x64x32xbf16, #tpu.memory_space<vmem>>, vector<1x64x32xbf16>
    %18 = vector.shape_cast %17 : vector<1x64x32xbf16> to vector<64x32xbf16>
    %cst_12 = arith.constant dense<0.000000e+00> : vector<256x32xf32>
    %19 = tpu.matmul %16, %18, %cst_12 {dimension_numbers = #tpu.dot_dimension_numbers<[1], [0], [0], [1], [0, 0, 1, 1], [], []>} : vector<256x64xbf16>, vector<64x32xbf16>, vector<256x32xf32> -> vector<256x32xf32>
    %20 = arith.addf %14, %19 : vector<256x32xf32>
    %21 = vector.extract_strided_slice %1 {offsets = [1, 1, 0], sizes = [16, 16, 64], strides = [1, 1, 1]} : vector<17x17x64xbf16> to vector<16x16x64xbf16>
    %22 = vector.shape_cast %21 : vector<16x16x64xbf16> to vector<256x64xbf16>
    %c3 = arith.constant 3 : index
    %c0_13 = arith.constant 0 : index
    %c0_14 = arith.constant 0 : index
    %23 = vector.load %arg2[%c3, %c0_13, %c0_14] : memref<4x64x32xbf16, #tpu.memory_space<vmem>>, vector<1x64x32xbf16>
    %24 = vector.shape_cast %23 : vector<1x64x32xbf16> to vector<64x32xbf16>
    %cst_15 = arith.constant dense<0.000000e+00> : vector<256x32xf32>
    %25 = tpu.matmul %22, %24, %cst_15 {dimension_numbers = #tpu.dot_dimension_numbers<[1], [0], [0], [1], [0, 0, 1, 1], [], []>} : vector<256x64xbf16>, vector<64x32xbf16>, vector<256x32xf32> -> vector<256x32xf32>
    %26 = arith.addf %20, %25 : vector<256x32xf32>
    %cst_16 = arith.constant dense<0.000000e+00> : vector<32xf32>
    %27 = vector.multi_reduction <add>, %26, %cst_16 [0] : vector<256x32xf32> to vector<32xf32>
    %28 = vector.shape_cast %27 : vector<32xf32> to vector<1x32xf32>
    %cst_17 = arith.constant 2.560000e+02 : f32
    %29 = vector.broadcast %cst_17 : f32 to vector<1x32xf32>
    %30 = arith.divf %28, %29 : vector<1x32xf32>
    %31 = vector.broadcast %30 : vector<1x32xf32> to vector<256x32xf32>
    %32 = arith.subf %26, %31 : vector<256x32xf32>
    %33 = arith.mulf %32, %32 : vector<256x32xf32>
    %cst_18 = arith.constant dense<0.000000e+00> : vector<32xf32>
    %34 = vector.multi_reduction <add>, %33, %cst_18 [0] : vector<256x32xf32> to vector<32xf32>
    %35 = vector.shape_cast %34 : vector<32xf32> to vector<1x32xf32>
    %cst_19 = arith.constant 2.560000e+02 : f32
    %36 = vector.broadcast %cst_19 : f32 to vector<1x32xf32>
    %37 = arith.divf %35, %36 : vector<1x32xf32>
    %38 = vector.broadcast %30 : vector<1x32xf32> to vector<256x32xf32>
    %39 = arith.subf %26, %38 : vector<256x32xf32>
    %cst_20 = arith.constant 9.99999974E-6 : f32
    %40 = vector.broadcast %cst_20 : f32 to vector<1x32xf32>
    %41 = arith.addf %37, %40 : vector<1x32xf32>
    %42 = math.rsqrt %41 : vector<1x32xf32>
    %43 = vector.broadcast %42 : vector<1x32xf32> to vector<256x32xf32>
    %44 = arith.mulf %39, %43 : vector<256x32xf32>
    %c0_21 = arith.constant 0 : index
    %c0_22 = arith.constant 0 : index
    %45 = vector.load %arg3[%c0_21, %c0_22] : memref<1x32xf32, #tpu.memory_space<vmem>>, vector<1x32xf32>
    %46 = vector.broadcast %45 : vector<1x32xf32> to vector<256x32xf32>
    %47 = arith.mulf %44, %46 : vector<256x32xf32>
    %c0_23 = arith.constant 0 : index
    %c0_24 = arith.constant 0 : index
    %48 = vector.load %arg4[%c0_23, %c0_24] : memref<1x32xf32, #tpu.memory_space<vmem>>, vector<1x32xf32>
    %49 = vector.broadcast %48 : vector<1x32xf32> to vector<256x32xf32>
    %50 = arith.addf %47, %49 : vector<256x32xf32>
    %cst_25 = arith.constant 0.000000e+00 : f32
    %51 = vector.broadcast %cst_25 : f32 to vector<256x32xf32>
    %52 = arith.cmpf ogt, %50, %51 : vector<256x32xf32>
    %cst_26 = arith.constant 2.000000e-01 : f32
    %53 = vector.broadcast %cst_26 : f32 to vector<256x32xf32>
    %54 = arith.mulf %53, %50 : vector<256x32xf32>
    %55 = arith.select %52, %50, %54 : vector<256x32xi1>, vector<256x32xf32>
    %c0_27 = arith.constant 0 : index
    %c0_28 = arith.constant 0 : index
    %c0_29 = arith.constant 0 : index
    %56 = vector.load %arg5[%c0_27, %c0_28, %c0_29] : memref<1x256x32xf32, #tpu.memory_space<vmem>>, vector<1x256x32xf32>
    %57 = vector.shape_cast %56 : vector<1x256x32xf32> to vector<256x32xf32>
    %58 = vector.shape_cast %55 : vector<256x32xf32> to vector<1x256x32xf32>
    tpu.vector_store %arg5[%c0_27, %c0_28, %c0_29], %58 {strides = array<i32>} : memref<1x256x32xf32, #tpu.memory_space<vmem>>, vector<1x256x32xf32>,
    return
  }
  func.func @transform_0(%arg0: i32) -> (i32, i32, i32, i32) {
    %c0_i32 = arith.constant 0 : i32
    %c0_i32_0 = arith.constant 0 : i32
    %c0_i32_1 = arith.constant 0 : i32
    %c0_i32_2 = arith.constant 0 : i32
    return %arg0, %c0_i32, %c0_i32_0, %c0_i32_1 : i32, i32, i32, i32
  }
  func.func @transform_1(%arg0: i32) -> (i32, i32, i32) {
    %c0_i32 = arith.constant 0 : i32
    %c0_i32_0 = arith.constant 0 : i32
    %c0_i32_1 = arith.constant 0 : i32
    %c0_i32_2 = arith.constant 0 : i32
    return %c0_i32, %c0_i32_0, %c0_i32_1 : i32, i32, i32
  }
  func.func @transform_2(%arg0: i32) -> (i32, i32) {
    %c0_i32 = arith.constant 0 : i32
    %c0_i32_0 = arith.constant 0 : i32
    %c0_i32_1 = arith.constant 0 : i32
    return %c0_i32, %c0_i32_0 : i32, i32
  }
  func.func @transform_3(%arg0: i32) -> (i32, i32) {
    %c0_i32 = arith.constant 0 : i32
    %c0_i32_0 = arith.constant 0 : i32
    %c0_i32_1 = arith.constant 0 : i32
    return %c0_i32, %c0_i32_0 : i32, i32
  }
  func.func @transform_4(%arg0: i32) -> (i32, i32, i32) {
    %c0_i32 = arith.constant 0 : i32
    %c0_i32_0 = arith.constant 0 : i32
    %c0_i32_1 = arith.constant 0 : i32
    return %arg0, %c0_i32, %c0_i32_0 : i32, i32, i32
  }
}

</mosaic_0001>

<llo_original>
// kernel: tpu_custom_call.1
$region0: #{tpu_custom_call.1}
  #allocation0 [shape = 'u32[]', space=smem, size = 0x4, offset = 0x4, fixed_abs, tag = 'smem constant byte address 0x4 - core index']
  #allocation1 [shape = 'u32[144,128]{1,0:T(1,128)}', space=vmem, size = 0x12000, scoped, tag = 'internal scratch']
  %s0 = inlined_call_operand.vmem [shape: bf16[2,17,17,64], index: 0, kind: input, shape index: {}]
  %s1 = inlined_call_operand.vmem [shape: bf16[4,64,32], index: 1, kind: input, shape index: {}]
  %s2 = inlined_call_operand.vmem [shape: f32[1,32], index: 2, kind: input, shape index: {}]
  %s3 = inlined_call_operand.vmem [shape: f32[1,32], index: 3, kind: input, shape index: {}]
  %s4 = inlined_call_operand.vmem [shape: f32[2,256,32], index: 4, kind: output, shape index: {}]
  %s5 = sld [smem:[#allocation0]]
  $region49: #{tpu_custom_call.1} parent=0
    _
  %s7 = ssub.s32 1, %s5
  %s8 = scalar_select 0, %s7, %s5
  loop: start=0, step=1, limit=4
  $region2: #{tpu_custom_call.1} parent=0 // loop_pre_header
    _
  $region3: #{tpu_custom_call.1} parent=0 // loop_header
    %s10 = sphi 0, %s14
    %p11 = scmp.ge.s32.totalorder %s10, 4
    %s20 = sphi 0, %s22
    %s23 = sphi 0, %s20
    %s24 = sphi 0, %s23
    %s40 = sphi 0, %s24
    %s44 = sphi 0, %s44
    %s46 = sphi 0, %s44
    %s47 = sphi 0, %s46
    %s61 = sphi 0, %s47
    %s65 = sphi 0, %s65
    %s67 = sphi 0, %s65
    %s68 = sphi 0, %s67
    %s82 = sphi 0, %s68
    %s86 = sphi 0, %s86
    %s88 = sphi 0, %s86
    %s89 = sphi 0, %s88
    %s103 = sphi 0, %s89
    %s109 = sphi 0, %s111
    %s112 = sphi 0, %s109
    %s113 = sphi 0, %s112
    %s129 = sphi 0, %s113
  $region4: #{tpu_custom_call.1} parent=0 // loop_header_branch
    %13 = sbr.rel (%p11) target = $region8
  $region5: #{tpu_custom_call.1} parent=0 // loop_body
    %s15 = ssub.s32 %s10, 1
    %s16 = ssub.s32 %s10, 2
    %s17 = sadd.s32 %s10, 1
    %s18 = ssub.s32 %s10, %s17
    %p19 = scmp.eq.s32.totalorder %s18, 0
    %s21 = sadd.s32 %s20, 1
    %s22 = scalar_select %p19, %s20, %s21
    %p25 = pneg %p19
    %p26 = scmp.eq.s32.totalorder %s10, 1
    %p27 = por %p25, %p26
    %p28 = scmp.ne.s32.totalorder %s20, %s23
    %p29 = scmp.eq.s32.totalorder %s10, 0
    %p30 = por %p28, %p29
    %p31 = scmp.ne.s32.totalorder %s20, %s23
    %p32 = scmp.eq.s32.totalorder %s15, 1
    %p33 = por %p31, %p32
    %p34 = scmp.ne.s32.totalorder %s23, %s24
    %p35 = scmp.eq.s32.totalorder %s15, 0
    %p36 = por %p34, %p35
    %p37 = scmp.ne.s32.totalorder %s23, %s24
    %p38 = scmp.eq.s32.totalorder %s16, 1
    %p39 = por %p37, %p38
    %p41 = scmp.ne.s32.totalorder %s24, %s40
    %p42 = scmp.eq.s32.totalorder %s16, 0
    %p43 = por %p41, %p42
    %s45 = sadd.s32 %s44, 1
    %p48 = scmp.eq.s32.totalorder %s10, 1
    %p49 = scmp.ne.s32.totalorder %s44, %s46
    %p50 = scmp.eq.s32.totalorder %s10, 0
    %p51 = por %p49, %p50
    %p52 = scmp.ne.s32.totalorder %s44, %s46
    %p53 = scmp.eq.s32.totalorder %s15, 1
    %p54 = por %p52, %p53
    %p55 = scmp.ne.s32.totalorder %s46, %s47
    %p56 = scmp.eq.s32.totalorder %s15, 0
    %p57 = por %p55, %p56
    %p58 = scmp.ne.s32.totalorder %s46, %s47
    %p59 = scmp.eq.s32.totalorder %s16, 1
    %p60 = por %p58, %p59
    %p62 = scmp.ne.s32.totalorder %s47, %s61
    %p63 = scmp.eq.s32.totalorder %s16, 0
    %p64 = por %p62, %p63
    %s66 = sadd.s32 %s65, 1
    %p69 = scmp.eq.s32.totalorder %s10, 1
    %p70 = scmp.ne.s32.totalorder %s65, %s67
    %p71 = scmp.eq.s32.totalorder %s10, 0
    %p72 = por %p70, %p71
    %p73 = scmp.ne.s32.totalorder %s65, %s67
    %p74 = scmp.eq.s32.totalorder %s15, 1
    %p75 = por %p73, %p74
    %p76 = scmp.ne.s32.totalorder %s67, %s68
    %p77 = scmp.eq.s32.totalorder %s15, 0
    %p78 = por %p76, %p77
    %p79 = scmp.ne.s32.totalorder %s67, %s68
    %p80 = scmp.eq.s32.totalorder %s16, 1
    %p81 = por %p79, %p80
    %p83 = scmp.ne.s32.totalorder %s68, %s82
    %p84 = scmp.eq.s32.totalorder %s16, 0
    %p85 = por %p83, %p84
    %s87 = sadd.s32 %s86, 1
    %p90 = scmp.eq.s32.totalorder %s10, 1
    %p91 = scmp.ne.s32.totalorder %s86, %s88
    %p92 = scmp.eq.s32.totalorder %s10, 0
    %p93 = por %p91, %p92
    %p94 = scmp.ne.s32.totalorder %s86, %s88
    %p95 = scmp.eq.s32.totalorder %s15, 1
    %p96 = por %p94, %p95
    %p97 = scmp.ne.s32.totalorder %s88, %s89
    %p98 = scmp.eq.s32.totalorder %s15, 0
    %p99 = por %p97, %p98
    %p100 = scmp.ne.s32.totalorder %s88, %s89
    %p101 = scmp.eq.s32.totalorder %s16, 1
    %p102 = por %p100, %p101
    %p104 = scmp.ne.s32.totalorder %s89, %s103
    %p105 = scmp.eq.s32.totalorder %s16, 0
    %p106 = por %p104, %p105
    %s107 = ssub.s32 %s10, %s17
    %p108 = scmp.eq.s32.totalorder %s107, 0
    %s110 = sadd.s32 %s109, 1
    %s111 = scalar_select %p108, %s109, %s110
    %p114 = pneg %p108
    %p115 = scmp.eq.s32.totalorder %s10, 1
    %p116 = por %p114, %p115
    %p117 = scmp.ne.s32.totalorder %s109, %s112
    %p118 = scmp.eq.s32.totalorder %s10, 0
    %p119 = por %p117, %p118
    %p120 = scmp.ne.s32.totalorder %s109, %s112
    %p121 = scmp.eq.s32.totalorder %s15, 1
    %p122 = por %p120, %p121
    %p123 = scmp.ne.s32.totalorder %s112, %s113
    %p124 = scmp.eq.s32.totalorder %s15, 0
    %p125 = por %p123, %p124
    %p126 = scmp.ne.s32.totalorder %s112, %s113
    %p127 = scmp.eq.s32.totalorder %s16, 1
    %p128 = por %p126, %p127
    %p130 = scmp.ne.s32.totalorder %s113, %s129
    %p131 = scmp.eq.s32.totalorder %s16, 0
    %p132 = por %p130, %p131
    %p133 = scmp.le.s32.totalorder 1, %s10
    %p134 = scmp.lt.s32.totalorder %s10, 3
    %p135 = pnand %p133, %p134
    %p136 = pneg %p135
    // Predicated region
    $region9: #{tpu_custom_call.1} parent=5 // pred_check
      _
    $region10: #{tpu_custom_call.1} parent=5 // pred_check_branch
      %138 = sbr.rel (%p135) target = $region12
    $region11: #{tpu_custom_call.1} parent=5 // pred_region
      %s139 = ssub.s32 %s10, 1
      // Predicated region
      $region13: #{tpu_custom_call.1} parent=11 // pred_check
        %p140 = pneg %p57
      $region14: #{tpu_custom_call.1} parent=11 // pred_check_branch
        %142 = sbr.rel (%p140) target = $region16
      $region15: #{tpu_custom_call.1} parent=11 // pred_region
        _
      $region16: #{tpu_custom_call.1} parent=11 // pred_fallthru
        _
      // Predicated region
      $region17: #{tpu_custom_call.1} parent=11 // pred_check
        %p143 = pneg %p78
      $region18: #{tpu_custom_call.1} parent=11 // pred_check_branch
        %145 = sbr.rel (%p143) target = $region20
      $region19: #{tpu_custom_call.1} parent=11 // pred_region
        _
      $region20: #{tpu_custom_call.1} parent=11 // pred_fallthru
        _
      // Predicated region
      $region21: #{tpu_custom_call.1} parent=11 // pred_check
        %p146 = pneg %p99
      $region22: #{tpu_custom_call.1} parent=11 // pred_check_branch
        %148 = sbr.rel (%p146) target = $region24
      $region23: #{tpu_custom_call.1} parent=11 // pred_region
        _
      $region24: #{tpu_custom_call.1} parent=11 // pred_fallthru
        _
    $region12: #{tpu_custom_call.1} parent=5 // pred_fallthru
      _
    %p149 = scmp.lt.s32.totalorder %s10, 2
    // Predicated region
    $region25: #{tpu_custom_call.1} parent=5 // pred_check
      %p150 = pneg %p149
    $region26: #{tpu_custom_call.1} parent=5 // pred_check_branch
      %152 = sbr.rel (%p150) target = $region28
    $region27: #{tpu_custom_call.1} parent=5 // pred_region
      // Predicated region
      $region29: #{tpu_custom_call.1} parent=27 // pred_check
        %p153 = pneg %p30
      $region30: #{tpu_custom_call.1} parent=27 // pred_check_branch
        %155 = sbr.rel (%p153) target = $region32
      $region31: #{tpu_custom_call.1} parent=27 // pred_region
        %p156 = scmp.lt.s32.totalorder %s10, 1
        %s157 = scalar_select %p156, %s10, 1
        %s158 = smul.addr %s157, 51
        %s159 = smul.addr %s158, 4
        %s160 = scalar_lea.vmem %s0, %s159
      $region32: #{tpu_custom_call.1} parent=27 // pred_fallthru
        _
    $region28: #{tpu_custom_call.1} parent=5 // pred_fallthru
      _
    %p161 = scmp.le.s32.totalorder 1, %s10
    %p162 = scmp.lt.s32.totalorder %s10, 3
    %p163 = pnand %p161, %p162
    %p164 = pneg %p163
    // Predicated region
    $region33: #{tpu_custom_call.1} parent=5 // pred_check
      _
    $region34: #{tpu_custom_call.1} parent=5 // pred_check_branch
      %166 = sbr.rel (%p163) target = $region36
    $region35: #{tpu_custom_call.1} parent=5 // pred_region
      %s167 = ssub.s32 %s10, 1
      %p168 = scmp.lt.s32.totalorder %s15, 1
      %s169 = scalar_select %p168, %s15, 1
      %s170 = smul.addr %s169, 51
      %s171 = smul.addr %s170, 4
      %s172 = scalar_lea.vmem %s0, %s171
      %p173 = pneg %p36
      %p174 = pneg %p33
      %p175 = pneg %p57
      %p176 = pneg %p54
      %p177 = pneg %p78
      %p178 = pneg %p75
      %p179 = pneg %p99
      %p180 = pneg %p96
      %p181 = pneg %p125
      %p182 = pneg %p122
      %p183 = scmp.lt.s32.totalorder %s15, 1
      %s184 = scalar_select %p183, %s15, 1
      %s185 = smul.addr %s184, 32
      %s186 = smul.addr %s185, 8
      %s187 = scalar_lea.vmem %s4, %s186
      %p188 = scmp.lt.s32.totalorder %s15, 1
      %s189 = scalar_select %p188, %s15, 1
      %s190 = smul.addr %s189, 51
      %s191 = smul.addr %s190, 4
      %s192 = scalar_lea.vmem %s0, %s191
      %p193 = scmp.lt.s32.totalorder %s15, 1
      %s194 = scalar_select %p193, %s15, 1
      %s195 = smul.addr %s194, 32
      %s196 = smul.addr %s195, 8
      %s197 = scalar_lea.vmem %s4, %s196
      %v199 = vld [vmem:[%s192] sm:$0xf]
      %v200 = vld [vmem:[%s192 + $0x4] sm:$0xf]
      %v201 = vld [vmem:[%s192 + $0x8] sm:$0x1]
      %v202 = vld [vmem:[%s192 + $0xc] sm:$0xf]
      %v203 = vld [vmem:[%s192 + $0x10] sm:$0xf]
      %v204 = vld [vmem:[%s192 + $0x14] sm:$0x1]
      %v205 = vld [vmem:[%s192 + $0x18] sm:$0xf]
      %v206 = vld [vmem:[%s192 + $0x1c] sm:$0xf]
      %v207 = vld [vmem:[%s192 + $0x20] sm:$0x1]
      %v208 = vld [vmem:[%s192 + $0x24] sm:$0xf]
      %v209 = vld [vmem:[%s192 + $0x28] sm:$0xf]
      %v210 = vld [vmem:[%s192 + $0x2c] sm:$0x1]
      %v211 = vld [vmem:[%s192 + $0x30] sm:$0xf]
      %v212 = vld [vmem:[%s192 + $0x34] sm:$0xf]
      %v213 = vld [vmem:[%s192 + $0x38] sm:$0x1]
      %v214 = vld [vmem:[%s192 + $0x3c] sm:$0xf]
      %v215 = vld [vmem:[%s192 + $0x40] sm:$0xf]
      %v216 = vld [vmem:[%s192 + $0x44] sm:$0x1]
      %v217 = vld [vmem:[%s192 + $0x48] sm:$0xf]
      %v218 = vld [vmem:[%s192 + $0x4c] sm:$0xf]
      %v219 = vld [vmem:[%s192 + $0x50] sm:$0x1]
      %v220 = vld [vmem:[%s192 + $0x54] sm:$0xf]
      %v221 = vld [vmem:[%s192 + $0x58] sm:$0xf]
      %v222 = vld [vmem:[%s192 + $0x5c] sm:$0x1]
      %v223 = vld [vmem:[%s192 + $0x60] sm:$0xf]
      %v224 = vld [vmem:[%s192 + $0x64] sm:$0xf]
      %v225 = vld [vmem:[%s192 + $0x68] sm:$0x1]
      %v226 = vld [vmem:[%s192 + $0x6c] sm:$0xf]
      %v227 = vld [vmem:[%s192 + $0x70] sm:$0xf]
      %v228 = vld [vmem:[%s192 + $0x74] sm:$0x1]
      %v229 = vld [vmem:[%s192 + $0x78] sm:$0xf]
      %v230 = vld [vmem:[%s192 + $0x7c] sm:$0xf]
      %v231 = vld [vmem:[%s192 + $0x80] sm:$0x1]
      %v232 = vld [vmem:[%s192 + $0x84] sm:$0xf]
      %v233 = vld [vmem:[%s192 + $0x88] sm:$0xf]
      %v234 = vld [vmem:[%s192 + $0x8c] sm:$0x1]
      %v235 = vld [vmem:[%s192 + $0x90] sm:$0xf]
      %v236 = vld [vmem:[%s192 + $0x94] sm:$0xf]
      %v237 = vld [vmem:[%s192 + $0x98] sm:$0x1]
      %v238 = vld [vmem:[%s192 + $0x9c] sm:$0xf]
      %v239 = vld [vmem:[%s192 + $0xa0] sm:$0xf]
      %v240 = vld [vmem:[%s192 + $0xa4] sm:$0x1]
      %v241 = vld [vmem:[%s192 + $0xa8] sm:$0xf]
      %v242 = vld [vmem:[%s192 + $0xac] sm:$0xf]
      %v243 = vld [vmem:[%s192 + $0xb0] sm:$0x1]
      %v244 = vld [vmem:[%s192 + $0xb4] sm:$0xf]
      %v245 = vld [vmem:[%s192 + $0xb8] sm:$0xf]
      %v246 = vld [vmem:[%s192 + $0xbc] sm:$0x1]
      %v247 = vld [vmem:[%s192 + $0xc0] sm:$0xf]
      %v248 = vld [vmem:[%s192 + $0xc4] sm:$0xf]
      %v249 = vld [vmem:[%s192 + $0xc8] sm:$0x1]
      %v250 = vld [vmem:[%s1] sm:$0xf]
      %v251 = vld [vmem:[%s1 + $0x4] sm:$0xf]
      %v252 = vld [vmem:[%s1 + $0x8] sm:$0xf]
      %v253 = vld [vmem:[%s1 + $0xc] sm:$0xf]
      %v254 = vld [vmem:[%s1 + $0x10] sm:$0xf]
      %v255 = vld [vmem:[%s1 + $0x14] sm:$0xf]
      %v256 = vld [vmem:[%s1 + $0x18] sm:$0xf]
      %v257 = vld [vmem:[%s1 + $0x1c] sm:$0xf]
      %vm258 = vsmask.f32 3328
      %vm259 = vsmask.f32 7440
      %vm260 = vmor %vm258, %vm259
      %v262 = vshrl.u32 %v199, 16
      %v264 = vrot.slane %v262, 4
      %v265 = vshll.u32 %v199, 16
      %v267 = vrot.slane %v265, 5
      %v268 = vor.u32 %v264, %v267
      %v269 = vrot.slane %v268, 4
      %v271 = vshll.u32 %v200, 16
      %v273 = vrot.slane %v271, 5
      %v274 = vsel %vm260, %v269, %v273
      %v275 = vshrl.u32 %v200, 16
      %v277 = vrot.slane %v275, 4
      %v278 = vor.u32 %v277, %v273
      %v279 = vrot.slane %v278, 4
      %v281 = vshll.u32 %v201, 16
      %v283 = vrot.slane %v281, 5
      %v284 = vsel %vm260, %v279, %v283
      %v286 = vshrl.u32 %v202, 16
      %v288 = vrot.slane %v286, 4
      %v289 = vshll.u32 %v202, 16
      %v291 = vrot.slane %v289, 5
      %v292 = vor.u32 %v288, %v291
      %v293 = vrot.slane %v292, 4
      %v295 = vshll.u32 %v203, 16
      %v297 = vrot.slane %v295, 5
      %v298 = vsel %vm260, %v293, %v297
      %v299 = vshrl.u32 %v203, 16
      %v301 = vrot.slane %v299, 4
      %v302 = vor.u32 %v301, %v297
      %v303 = vrot.slane %v302, 4
      %v305 = vshll.u32 %v204, 16
      %v307 = vrot.slane %v305, 5
      %v308 = vsel %vm260, %v303, %v307
      %v310 = vshrl.u32 %v205, 16
      %v312 = vrot.slane %v310, 4
      %v313 = vshll.u32 %v205, 16
      %v315 = vrot.slane %v313, 5
      %v316 = vor.u32 %v312, %v315
      %v317 = vrot.slane %v316, 4
      %v319 = vshll.u32 %v206, 16
      %v321 = vrot.slane %v319, 5
      %v322 = vsel %vm260, %v317, %v321
      %v323 = vshrl.u32 %v206, 16
      %v325 = vrot.slane %v323, 4
      %v326 = vor.u32 %v325, %v321
      %v327 = vrot.slane %v326, 4
      %v329 = vshll.u32 %v207, 16
      %v331 = vrot.slane %v329, 5
      %v332 = vsel %vm260, %v327, %v331
      %v334 = vshrl.u32 %v208, 16
      %v336 = vrot.slane %v334, 4
      %v337 = vshll.u32 %v208, 16
      %v339 = vrot.slane %v337, 5
      %v340 = vor.u32 %v336, %v339
      %v341 = vrot.slane %v340, 4
      %v343 = vshll.u32 %v209, 16
      %v345 = vrot.slane %v343, 5
      %v346 = vsel %vm260, %v341, %v345
      %v347 = vshrl.u32 %v209, 16
      %v349 = vrot.slane %v347, 4
      %v350 = vor.u32 %v349, %v345
      %v351 = vrot.slane %v350, 4
      %v353 = vshll.u32 %v210, 16
      %v355 = vrot.slane %v353, 5
      %v356 = vsel %vm260, %v351, %v355
      %v358 = vshrl.u32 %v211, 16
      %v360 = vrot.slane %v358, 4
      %v361 = vshll.u32 %v211, 16
      %v363 = vrot.slane %v361, 5
      %v364 = vor.u32 %v360, %v363
      %v365 = vrot.slane %v364, 4
      %v367 = vshll.u32 %v212, 16
      %v369 = vrot.slane %v367, 5
      %v370 = vsel %vm260, %v365, %v369
      %v371 = vshrl.u32 %v212, 16
      %v373 = vrot.slane %v371, 4
      %v374 = vor.u32 %v373, %v369
      %v375 = vrot.slane %v374, 4
      %v377 = vshll.u32 %v213, 16
      %v379 = vrot.slane %v377, 5
      %v380 = vsel %vm260, %v375, %v379
      %v382 = vshrl.u32 %v214, 16
      %v384 = vrot.slane %v382, 4
      %v385 = vshll.u32 %v214, 16
      %v387 = vrot.slane %v385, 5
      %v388 = vor.u32 %v384, %v387
      %v389 = vrot.slane %v388, 4
      %v391 = vshll.u32 %v215, 16
      %v393 = vrot.slane %v391, 5
      %v394 = vsel %vm260, %v389, %v393
      %v395 = vshrl.u32 %v215, 16
      %v397 = vrot.slane %v395, 4
      %v398 = vor.u32 %v397, %v393
      %v399 = vrot.slane %v398, 4
      %v401 = vshll.u32 %v216, 16
      %v403 = vrot.slane %v401, 5
      %v404 = vsel %vm260, %v399, %v403
      %v406 = vshrl.u32 %v217, 16
      %v408 = vrot.slane %v406, 4
      %v409 = vshll.u32 %v217, 16
      %v411 = vrot.slane %v409, 5
      %v412 = vor.u32 %v408, %v411
      %v413 = vrot.slane %v412, 4
      %v415 = vshll.u32 %v218, 16
      %v417 = vrot.slane %v415, 5
      %v418 = vsel %vm260, %v413, %v417
      %v419 = vshrl.u32 %v218, 16
      %v421 = vrot.slane %v419, 4
      %v422 = vor.u32 %v421, %v417
      %v423 = vrot.slane %v422, 4
      %v425 = vshll.u32 %v219, 16
      %v427 = vrot.slane %v425, 5
      %v428 = vsel %vm260, %v423, %v427
      %v430 = vshrl.u32 %v220, 16
      %v432 = vrot.slane %v430, 4
      %v433 = vshll.u32 %v220, 16
      %v435 = vrot.slane %v433, 5
      %v436 = vor.u32 %v432, %v435
      %v437 = vrot.slane %v436, 4
      %v439 = vshll.u32 %v221, 16
      %v441 = vrot.slane %v439, 5
      %v442 = vsel %vm260, %v437, %v441
      %v443 = vshrl.u32 %v221, 16
      %v445 = vrot.slane %v443, 4
      %v446 = vor.u32 %v445, %v441
      %v447 = vrot.slane %v446, 4
      %v449 = vshll.u32 %v222, 16
      %v451 = vrot.slane %v449, 5
      %v452 = vsel %vm260, %v447, %v451
      %v454 = vshrl.u32 %v223, 16
      %v456 = vrot.slane %v454, 4
      %v457 = vshll.u32 %v223, 16
      %v459 = vrot.slane %v457, 5
      %v460 = vor.u32 %v456, %v459
      %v461 = vrot.slane %v460, 4
      %v463 = vshll.u32 %v224, 16
      %v465 = vrot.slane %v463, 5
      %v466 = vsel %vm260, %v461, %v465
      %v467 = vshrl.u32 %v224, 16
      %v469 = vrot.slane %v467, 4
      %v470 = vor.u32 %v469, %v465
      %v471 = vrot.slane %v470, 4
      %v473 = vshll.u32 %v225, 16
      %v475 = vrot.slane %v473, 5
      %v476 = vsel %vm260, %v471, %v475
      %v478 = vshrl.u32 %v226, 16
      %v480 = vrot.slane %v478, 4
      %v481 = vshll.u32 %v226, 16
      %v483 = vrot.slane %v481, 5
      %v484 = vor.u32 %v480, %v483
      %v485 = vrot.slane %v484, 4
      %v487 = vshll.u32 %v227, 16
      %v489 = vrot.slane %v487, 5
      %v490 = vsel %vm260, %v485, %v489
      %v491 = vshrl.u32 %v227, 16
      %v493 = vrot.slane %v491, 4
      %v494 = vor.u32 %v493, %v489
      %v495 = vrot.slane %v494, 4
      %v497 = vshll.u32 %v228, 16
      %v499 = vrot.slane %v497, 5
      %v500 = vsel %vm260, %v495, %v499
      %v502 = vshrl.u32 %v229, 16
      %v504 = vrot.slane %v502, 4
      %v505 = vshll.u32 %v229, 16
      %v507 = vrot.slane %v505, 5
      %v508 = vor.u32 %v504, %v507
      %v509 = vrot.slane %v508, 4
      %v511 = vshll.u32 %v230, 16
      %v513 = vrot.slane %v511, 5
      %v514 = vsel %vm260, %v509, %v513
      %v515 = vshrl.u32 %v230, 16
      %v517 = vrot.slane %v515, 4
      %v518 = vor.u32 %v517, %v513
      %v519 = vrot.slane %v518, 4
      %v521 = vshll.u32 %v231, 16
      %v523 = vrot.slane %v521, 5
      %v524 = vsel %vm260, %v519, %v523
      %v526 = vshrl.u32 %v232, 16
      %v528 = vrot.slane %v526, 4
      %v529 = vshll.u32 %v232, 16
      %v531 = vrot.slane %v529, 5
      %v532 = vor.u32 %v528, %v531
      %v533 = vrot.slane %v532, 4
      %v535 = vshll.u32 %v233, 16
      %v537 = vrot.slane %v535, 5
      %v538 = vsel %vm260, %v533, %v537
      %v539 = vshrl.u32 %v233, 16
      %v541 = vrot.slane %v539, 4
      %v542 = vor.u32 %v541, %v537
      %v543 = vrot.slane %v542, 4
      %v545 = vshll.u32 %v234, 16
      %v547 = vrot.slane %v545, 5
      %v548 = vsel %vm260, %v543, %v547
      %v550 = vshrl.u32 %v235, 16
      %v552 = vrot.slane %v550, 4
      %v553 = vshll.u32 %v235, 16
      %v555 = vrot.slane %v553, 5
      %v556 = vor.u32 %v552, %v555
      %v557 = vrot.slane %v556, 4
      %v559 = vshll.u32 %v236, 16
      %v561 = vrot.slane %v559, 5
      %v562 = vsel %vm260, %v557, %v561
      %v563 = vshrl.u32 %v236, 16
      %v565 = vrot.slane %v563, 4
      %v566 = vor.u32 %v565, %v561
      %v567 = vrot.slane %v566, 4
      %v569 = vshll.u32 %v237, 16
      %v571 = vrot.slane %v569, 5
      %v572 = vsel %vm260, %v567, %v571
      %v574 = vshrl.u32 %v238, 16
      %v576 = vrot.slane %v574, 4
      %v577 = vshll.u32 %v238, 16
      %v579 = vrot.slane %v577, 5
      %v580 = vor.u32 %v576, %v579
      %v581 = vrot.slane %v580, 4
      %v583 = vshll.u32 %v239, 16
      %v585 = vrot.slane %v583, 5
      %v586 = vsel %vm260, %v581, %v585
      %v587 = vshrl.u32 %v239, 16
      %v589 = vrot.slane %v587, 4
      %v590 = vor.u32 %v589, %v585
      %v591 = vrot.slane %v590, 4
      %v593 = vshll.u32 %v240, 16
      %v595 = vrot.slane %v593, 5
      %v596 = vsel %vm260, %v591, %v595
      %v598 = vshrl.u32 %v241, 16
      %v600 = vrot.slane %v598, 4
      %v601 = vshll.u32 %v241, 16
      %v603 = vrot.slane %v601, 5
      %v604 = vor.u32 %v600, %v603
      %v605 = vrot.slane %v604, 4
      %v607 = vshll.u32 %v242, 16
      %v609 = vrot.slane %v607, 5
      %v610 = vsel %vm260, %v605, %v609
      %v611 = vshrl.u32 %v242, 16
      %v613 = vrot.slane %v611, 4
      %v614 = vor.u32 %v613, %v609
      %v615 = vrot.slane %v614, 4
      %v617 = vshll.u32 %v243, 16
      %v619 = vrot.slane %v617, 5
      %v620 = vsel %vm260, %v615, %v619
      %v622 = vshrl.u32 %v244, 16
      %v624 = vrot.slane %v622, 4
      %v625 = vshll.u32 %v244, 16
      %v627 = vrot.slane %v625, 5
      %v628 = vor.u32 %v624, %v627
      %v629 = vrot.slane %v628, 4
      %v631 = vshll.u32 %v245, 16
      %v633 = vrot.slane %v631, 5
      %v634 = vsel %vm260, %v629, %v633
      %v635 = vshrl.u32 %v245, 16
      %v637 = vrot.slane %v635, 4
      %v638 = vor.u32 %v637, %v633
      %v639 = vrot.slane %v638, 4
      %v641 = vshll.u32 %v246, 16
      %v643 = vrot.slane %v641, 5
      %v644 = vsel %vm260, %v639, %v643
      %s645 = scalar_lea.vmem %s1, 32
      %v646 = vld [vmem:[%s645] sm:$0xf]
      %v647 = vld [vmem:[%s645 + $0x4] sm:$0xf]
      %v648 = vld [vmem:[%s645 + $0x8] sm:$0xf]
      %v649 = vld [vmem:[%s645 + $0xc] sm:$0xf]
      %v650 = vld [vmem:[%s645 + $0x10] sm:$0xf]
      %v651 = vld [vmem:[%s645 + $0x14] sm:$0xf]
      %v652 = vld [vmem:[%s645 + $0x18] sm:$0xf]
      %v653 = vld [vmem:[%s645 + $0x1c] sm:$0xf]
      %v654 = vunpack.c.l.b16 %v274
      %v655 = vunpack.c.l.b16 %v284
      %v656 = vunpack.c.l.b16 %v298
      %v657 = vunpack.c.l.b16 %v308
      %v658 = vunpack.c.l.b16 %v322
      %v659 = vunpack.c.l.b16 %v332
      %v660 = vunpack.c.l.b16 %v346
      %v661 = vunpack.c.l.b16 %v356
      %v662 = vunpack.c.l.b16 %v370
      %v663 = vunpack.c.l.b16 %v380
      %v664 = vunpack.c.l.b16 %v394
      %v665 = vunpack.c.l.b16 %v404
      %v666 = vunpack.c.l.b16 %v418
      %v667 = vunpack.c.l.b16 %v428
      %v668 = vunpack.c.l.b16 %v442
      %v669 = vunpack.c.l.b16 %v452
      %v670 = vunpack.c.l.b16 %v466
      %v671 = vunpack.c.l.b16 %v476
      %v672 = vunpack.c.l.b16 %v490
      %v673 = vunpack.c.l.b16 %v500
      %v674 = vunpack.c.l.b16 %v514
      %v675 = vunpack.c.l.b16 %v524
      %v676 = vunpack.c.l.b16 %v538
      %v677 = vunpack.c.l.b16 %v548
      %v678 = vunpack.c.l.b16 %v562
      %v679 = vunpack.c.l.b16 %v572
      %v680 = vunpack.c.l.b16 %v586
      %v681 = vunpack.c.l.b16 %v596
      %v682 = vunpack.c.l.b16 %v610
      %v683 = vunpack.c.l.b16 %v620
      %v684 = vunpack.c.l.b16 %v634
      %v685 = vunpack.c.l.b16 %v644
      %v686 = vpack.c.b16 %v655, %v654
      %v687 = vpack.c.b16 %v657, %v656
      %v688 = vpack.c.b16 %v659, %v658
      %v689 = vpack.c.b16 %v661, %v660
      %v690 = vpack.c.b16 %v663, %v662
      %v691 = vpack.c.b16 %v665, %v664
      %v692 = vpack.c.b16 %v667, %v666
      %v693 = vpack.c.b16 %v669, %v668
      %v694 = vpack.c.b16 %v671, %v670
      %v695 = vpack.c.b16 %v673, %v672
      %v696 = vpack.c.b16 %v675, %v674
      %v697 = vpack.c.b16 %v677, %v676
      %v698 = vpack.c.b16 %v679, %v678
      %v699 = vpack.c.b16 %v681, %v680
      %v700 = vpack.c.b16 %v683, %v682
      %v701 = vpack.c.b16 %v685, %v684
      %v710 = vunpack.c.l.b16 %v646
      %v711 = vunpack.c.l.b16 %v647
      %v712 = vunpack.c.l.b16 %v648
      %v713 = vunpack.c.l.b16 %v649
      %v714 = vunpack.c.l.b16 %v650
      %v715 = vunpack.c.l.b16 %v651
      %v716 = vunpack.c.l.b16 %v652
      %v717 = vunpack.c.l.b16 %v653
      %v718 = vpack.c.b16 %v711, %v710
      %v719 = vpack.c.b16 %v713, %v712
      %v720 = vpack.c.b16 %v715, %v714
      %v721 = vpack.c.b16 %v717, %v716
      %vm726 = vcmask 523264
      %v728 = vsel %vm726, %v686, 0
      %v731 = vsel %vm726, %v687, 0
      %v734 = vsel %vm726, %v688, 0
      %v737 = vsel %vm726, %v689, 0
      %v740 = vsel %vm726, %v690, 0
      %v743 = vsel %vm726, %v691, 0
      %v746 = vsel %vm726, %v692, 0
      %v749 = vsel %vm726, %v693, 0
      %v752 = vsel %vm726, %v694, 0
      %v755 = vsel %vm726, %v695, 0
      %v758 = vsel %vm726, %v696, 0
      %v761 = vsel %vm726, %v697, 0
      %v764 = vsel %vm726, %v698, 0
      %v767 = vsel %vm726, %v699, 0
      %v770 = vsel %vm726, %v700, 0
      %v773 = vsel %vm726, %v701, 0
      %775 = vmatprep.subr.bf16.mxu0 0
      %776 = vmatpush1.bf16.msra.mxu0 %v718
      %777 = vmatprep.subr.bf16.mxu0 0
      %778 = vmatpush1.bf16.msra.mxu0 %v719
      %779 = vmatprep.subr.bf16.mxu0 0
      %780 = vmatpush1.bf16.msra.mxu0 %v720
      %781 = vmatprep.subr.bf16.mxu0 0
      %782 = vmatpush1.bf16.msra.mxu0 %v721
      %783 = vmatprep.subr.bf16.mxu0 0
      %784 = vmatpush1.bf16.msra.mxu0 0
      %785 = vmatprep.subr.bf16.mxu0 0
      %786 = vmatpush1.bf16.msra.mxu0 0
      %787 = vmatprep.subr.bf16.mxu0 0
      %788 = vmatpush1.bf16.msra.mxu0 0
      %789 = vmatprep.subr.bf16.mxu0 0
      %790 = vmatpush1.bf16.msra.mxu0 0
      %791 = vmatprep.subr.bf16.mxu0 0
      %792 = vmatpush1.bf16.msra.mxu0 0
      %793 = vmatprep.subr.bf16.mxu0 0
      %794 = vmatpush1.bf16.msra.mxu0 0
      %795 = vmatprep.subr.bf16.mxu0 0
      %796 = vmatpush1.bf16.msra.mxu0 0
      %797 = vmatprep.subr.bf16.mxu0 0
      %798 = vmatpush1.bf16.msra.mxu0 0
      %799 = vmatprep.subr.bf16.mxu0 0
      %800 = vmatpush1.bf16.msra.mxu0 0
      %801 = vmatprep.subr.bf16.mxu0 0
      %802 = vmatpush1.bf16.msra.mxu0 0
      %803 = vmatprep.subr.bf16.mxu0 0
      %804 = vmatpush1.bf16.msra.mxu0 0
      %805 = vmatprep.subr.bf16.mxu0 0
      %806 = vmatpush1.bf16.msra.mxu0 0
      %807 = vmatprep.mubr.bf16.mxu0 0
      %808 = vmatmul.mubr.bf16.gmra.mrb[0].mxu0 %v728
      %v809 = vpop.f32.mrb[0].mxu0
      %v810 = vadd.f32 0.0, %v809
      %v811 = vpop.f32.mrb[0].mxu0
      %v812 = vpop.f32.mrb[0].mxu0
      %v813 = vadd.f32 0.0, %v812
      %v814 = vpop.f32.mrb[0].mxu0
      %815 = vmatprep.mubr.bf16.mxu0 0
      %816 = vmatmul.mubr.bf16.gmra.mrb[0].mxu0 %v731
      %v817 = vpop.f32.mrb[0].mxu0
      %v818 = vadd.f32 0.0, %v817
      %v819 = vpop.f32.mrb[0].mxu0
      %v820 = vpop.f32.mrb[0].mxu0
      %v821 = vadd.f32 0.0, %v820
      %v822 = vpop.f32.mrb[0].mxu0
      %823 = vmatprep.mubr.bf16.mxu0 0
      %824 = vmatmul.mubr.bf16.gmra.mrb[0].mxu0 %v734
      %v825 = vpop.f32.mrb[0].mxu0
      %v826 = vadd.f32 0.0, %v825
      %v827 = vpop.f32.mrb[0].mxu0
      %v828 = vpop.f32.mrb[0].mxu0
      %v829 = vadd.f32 0.0, %v828
      %v830 = vpop.f32.mrb[0].mxu0
      %831 = vmatprep.mubr.bf16.mxu0 0
      %832 = vmatmul.mubr.bf16.gmra.mrb[0].mxu0 %v737
      %v833 = vpop.f32.mrb[0].mxu0
      %v834 = vadd.f32 0.0, %v833
      %v835 = vpop.f32.mrb[0].mxu0
      %v836 = vpop.f32.mrb[0].mxu0
      %v837 = vadd.f32 0.0, %v836
      %v838 = vpop.f32.mrb[0].mxu0
      %839 = vmatprep.mubr.bf16.mxu0 0
      %840 = vmatmul.mubr.bf16.gmra.mrb[0].mxu0 %v740
      %v841 = vpop.f32.mrb[0].mxu0
      %v842 = vadd.f32 0.0, %v841
      %v843 = vpop.f32.mrb[0].mxu0
      %v844 = vpop.f32.mrb[0].mxu0
      %v845 = vadd.f32 0.0, %v844
      %v846 = vpop.f32.mrb[0].mxu0
      %847 = vmatprep.mubr.bf16.mxu0 0
      %848 = vmatmul.mubr.bf16.gmra.mrb[0].mxu0 %v743
      %v849 = vpop.f32.mrb[0].mxu0
      %v850 = vadd.f32 0.0, %v849
      %v851 = vpop.f32.mrb[0].mxu0
      %v852 = vpop.f32.mrb[0].mxu0
      %v853 = vadd.f32 0.0, %v852
      %v854 = vpop.f32.mrb[0].mxu0
      %855 = vmatprep.mubr.bf16.mxu0 0
      %856 = vmatmul.mubr.bf16.gmra.mrb[0].mxu0 %v746
      %v857 = vpop.f32.mrb[0].mxu0
      %v858 = vadd.f32 0.0, %v857
      %v859 = vpop.f32.mrb[0].mxu0
      %v860 = vpop.f32.mrb[0].mxu0
      %v861 = vadd.f32 0.0, %v860
      %v862 = vpop.f32.mrb[0].mxu0
      %863 = vmatprep.mubr.bf16.mxu0 0
      %864 = vmatmul.mubr.bf16.gmra.mrb[0].mxu0 %v749
      %v865 = vpop.f32.mrb[0].mxu0
      %v866 = vadd.f32 0.0, %v865
      %v867 = vpop.f32.mrb[0].mxu0
      %v868 = vpop.f32.mrb[0].mxu0
      %v869 = vadd.f32 0.0, %v868
      %v870 = vpop.f32.mrb[0].mxu0
      %871 = vmatprep.mubr.bf16.mxu0 0
      %872 = vmatmul.mubr.bf16.gmra.mrb[0].mxu0 %v752
      %v873 = vpop.f32.mrb[0].mxu0
      %v874 = vadd.f32 0.0, %v873
      %v875 = vpop.f32.mrb[0].mxu0
      %v876 = vpop.f32.mrb[0].mxu0
      %v877 = vadd.f32 0.0, %v876
      %v878 = vpop.f32.mrb[0].mxu0
      %879 = vmatprep.mubr.bf16.mxu0 0
      %880 = vmatmul.mubr.bf16.gmra.mrb[0].mxu0 %v755
      %v881 = vpop.f32.mrb[0].mxu0
      %v882 = vadd.f32 0.0, %v881
      %v883 = vpop.f32.mrb[0].mxu0
      %v884 = vpop.f32.mrb[0].mxu0
      %v885 = vadd.f32 0.0, %v884
      %v886 = vpop.f32.mrb[0].mxu0
      %887 = vmatprep.mubr.bf16.mxu0 0
      %888 = vmatmul.mubr.bf16.gmra.mrb[0].mxu0 %v758
      %v889 = vpop.f32.mrb[0].mxu0
      %v890 = vadd.f32 0.0, %v889
      %v891 = vpop.f32.mrb[0].mxu0
      %v892 = vpop.f32.mrb[0].mxu0
      %v893 = vadd.f32 0.0, %v892
      %v894 = vpop.f32.mrb[0].mxu0
      %895 = vmatprep.mubr.bf16.mxu0 0
      %896 = vmatmul.mubr.bf16.gmra.mrb[0].mxu0 %v761
      %v897 = vpop.f32.mrb[0].mxu0
      %v898 = vadd.f32 0.0, %v897
      %v899 = vpop.f32.mrb[0].mxu0
      %v900 = vpop.f32.mrb[0].mxu0
      %v901 = vadd.f32 0.0, %v900
      %v902 = vpop.f32.mrb[0].mxu0
      %903 = vmatprep.mubr.bf16.mxu0 0
      %904 = vmatmul.mubr.bf16.gmra.mrb[0].mxu0 %v764
      %v905 = vpop.f32.mrb[0].mxu0
      %v906 = vadd.f32 0.0, %v905
      %v907 = vpop.f32.mrb[0].mxu0
      %v908 = vpop.f32.mrb[0].mxu0
      %v909 = vadd.f32 0.0, %v908
      %v910 = vpop.f32.mrb[0].mxu0
      %911 = vmatprep.mubr.bf16.mxu0 0
      %912 = vmatmul.mubr.bf16.gmra.mrb[0].mxu0 %v767
      %v913 = vpop.f32.mrb[0].mxu0
      %v914 = vadd.f32 0.0, %v913
      %v915 = vpop.f32.mrb[0].mxu0
      %v916 = vpop.f32.mrb[0].mxu0
      %v917 = vadd.f32 0.0, %v916
      %v918 = vpop.f32.mrb[0].mxu0
      %919 = vmatprep.mubr.bf16.mxu0 0
      %920 = vmatmul.mubr.bf16.gmra.mrb[0].mxu0 %v770
      %v921 = vpop.f32.mrb[0].mxu0
      %v922 = vadd.f32 0.0, %v921
      %v923 = vpop.f32.mrb[0].mxu0
      %v924 = vpop.f32.mrb[0].mxu0
      %v925 = vadd.f32 0.0, %v924
      %v926 = vpop.f32.mrb[0].mxu0
      %927 = vmatprep.mubr.bf16.mxu0 0
      %928 = vmatmul.mubr.bf16.gmra.mrb[0].mxu0 %v773
      %v929 = vpop.f32.mrb[0].mxu0
      %v930 = vadd.f32 0.0, %v929
      %v931 = vpop.f32.mrb[0].mxu0
      %v932 = vpop.f32.mrb[0].mxu0
      %v933 = vadd.f32 0.0, %v932
      %v934 = vpop.f32.mrb[0].mxu0
      %935 = vdwg.mxu0
      %v968 = vunpack.c.l.b16 %v199
      %v969 = vunpack.c.l.b16 %v200
      %v970 = vunpack.c.l.b16 %v202
      %v971 = vunpack.c.l.b16 %v203
      %v972 = vunpack.c.l.b16 %v205
      %v973 = vunpack.c.l.b16 %v206
      %v974 = vunpack.c.l.b16 %v208
      %v975 = vunpack.c.l.b16 %v209
      %v976 = vunpack.c.l.b16 %v211
      %v977 = vunpack.c.l.b16 %v212
      %v978 = vunpack.c.l.b16 %v214
      %v979 = vunpack.c.l.b16 %v215
      %v980 = vunpack.c.l.b16 %v217
      %v981 = vunpack.c.l.b16 %v218
      %v982 = vunpack.c.l.b16 %v220
      %v983 = vunpack.c.l.b16 %v221
      %v984 = vunpack.c.l.b16 %v223
      %v985 = vunpack.c.l.b16 %v224
      %v986 = vunpack.c.l.b16 %v226
      %v987 = vunpack.c.l.b16 %v227
      %v988 = vunpack.c.l.b16 %v229
      %v989 = vunpack.c.l.b16 %v230
      %v990 = vunpack.c.l.b16 %v232
      %v991 = vunpack.c.l.b16 %v233
      %v992 = vunpack.c.l.b16 %v235
      %v993 = vunpack.c.l.b16 %v236
      %v994 = vunpack.c.l.b16 %v238
      %v995 = vunpack.c.l.b16 %v239
      %v996 = vunpack.c.l.b16 %v241
      %v997 = vunpack.c.l.b16 %v242
      %v998 = vunpack.c.l.b16 %v244
      %v999 = vunpack.c.l.b16 %v245
      %v1000 = vpack.c.b16 %v969, %v968
      %v1001 = vpack.c.b16 %v971, %v970
      %v1002 = vpack.c.b16 %v973, %v972
      %v1003 = vpack.c.b16 %v975, %v974
      %v1004 = vpack.c.b16 %v977, %v976
      %v1005 = vpack.c.b16 %v979, %v978
      %v1006 = vpack.c.b16 %v981, %v980
      %v1007 = vpack.c.b16 %v983, %v982
      %v1008 = vpack.c.b16 %v985, %v984
      %v1009 = vpack.c.b16 %v987, %v986
      %v1010 = vpack.c.b16 %v989, %v988
      %v1011 = vpack.c.b16 %v991, %v990
      %v1012 = vpack.c.b16 %v993, %v992
      %v1013 = vpack.c.b16 %v995, %v994
      %v1014 = vpack.c.b16 %v997, %v996
      %v1015 = vpack.c.b16 %v999, %v998
      %v1024 = vunpack.c.l.b16 %v250
      %v1025 = vunpack.c.l.b16 %v251
      %v1026 = vunpack.c.l.b16 %v252
      %v1027 = vunpack.c.l.b16 %v253
      %v1028 = vunpack.c.l.b16 %v254
      %v1029 = vunpack.c.l.b16 %v255
      %v1030 = vunpack.c.l.b16 %v256
      %v1031 = vunpack.c.l.b16 %v257
      %v1032 = vpack.c.b16 %v1025, %v1024
      %v1033 = vpack.c.b16 %v1027, %v1026
      %v1034 = vpack.c.b16 %v1029, %v1028
      %v1035 = vpack.c.b16 %v1031, %v1030
      %v1041 = vsel %vm726, %v1000, 0
      %v1044 = vsel %vm726, %v1001, 0
      %v1047 = vsel %vm726, %v1002, 0
      %v1050 = vsel %vm726, %v1003, 0
      %v1053 = vsel %vm726, %v1004, 0
      %v1056 = vsel %vm726, %v1005, 0
      %v1059 = vsel %vm726, %v1006, 0
      %v1062 = vsel %vm726, %v1007, 0
      %v1065 = vsel %vm726, %v1008, 0
      %v1068 = vsel %vm726, %v1009, 0
      %v1071 = vsel %vm726, %v1010, 0
      %v1074 = vsel %vm726, %v1011, 0
      %v1077 = vsel %vm726, %v1012, 0
      %v1080 = vsel %vm726, %v1013, 0
      %v1083 = vsel %vm726, %v1014, 0
      %v1086 = vsel %vm726, %v1015, 0
      %1088 = vmatprep.subr.bf16.mxu0 0
      %1089 = vmatpush1.bf16.msra.mxu0 %v1032
      %1090 = vmatprep.subr.bf16.mxu0 0
      %1091 = vmatpush1.bf16.msra.mxu0 %v1033
      %1092 = vmatprep.subr.bf16.mxu0 0
      %1093 = vmatpush1.bf16.msra.mxu0 %v1034
      %1094 = vmatprep.subr.bf16.mxu0 0
      %1095 = vmatpush1.bf16.msra.mxu0 %v1035
      %1096 = vmatprep.subr.bf16.mxu0 0
      %1097 = vmatpush1.bf16.msra.mxu0 0
      %1098 = vmatprep.subr.bf16.mxu0 0
      %1099 = vmatpush1.bf16.msra.mxu0 0
      %1100 = vmatprep.subr.bf16.mxu0 0
      %1101 = vmatpush1.bf16.msra.mxu0 0
      %1102 = vmatprep.subr.bf16.mxu0 0
      %1103 = vmatpush1.bf16.msra.mxu0 0
      %1104 = vmatprep.subr.bf16.mxu0 0
      %1105 = vmatpush1.bf16.msra.mxu0 0
      %1106 = vmatprep.subr.bf16.mxu0 0
      %1107 = vmatpush1.bf16.msra.mxu0 0
      %1108 = vmatprep.subr.bf16.mxu0 0
      %1109 = vmatpush1.bf16.msra.mxu0 0
      %1110 = vmatprep.subr.bf16.mxu0 0
      %1111 = vmatpush1.bf16.msra.mxu0 0
      %1112 = vmatprep.subr.bf16.mxu0 0
      %1113 = vmatpush1.bf16.msra.mxu0 0
      %1114 = vmatprep.subr.bf16.mxu0 0
      %1115 = vmatpush1.bf16.msra.mxu0 0
      %1116 = vmatprep.subr.bf16.mxu0 0
      %1117 = vmatpush1.bf16.msra.mxu0 0
      %1118 = vmatprep.subr.bf16.mxu0 0
      %1119 = vmatpush1.bf16.msra.mxu0 0
      %1120 = vmatprep.mubr.bf16.mxu0 0
      %1121 = vmatmul.mubr.bf16.gmra.mrb[0].mxu0 %v1041
      %v1122 = vpop.f32.mrb[0].mxu0
      %v1123 = vadd.f32 %v810, %v1122
      %v1124 = vpop.f32.mrb[0].mxu0
      %v1125 = vpop.f32.mrb[0].mxu0
      %v1126 = vadd.f32 %v813, %v1125
      %v1127 = vpop.f32.mrb[0].mxu0
      %1128 = vmatprep.mubr.bf16.mxu0 0
      %1129 = vmatmul.mubr.bf16.gmra.mrb[0].mxu0 %v1044
      %v1130 = vpop.f32.mrb[0].mxu0
      %v1131 = vadd.f32 %v818, %v1130
      %v1132 = vpop.f32.mrb[0].mxu0
      %v1133 = vpop.f32.mrb[0].mxu0
      %v1134 = vadd.f32 %v821, %v1133
      %v1135 = vpop.f32.mrb[0].mxu0
      %1136 = vmatprep.mubr.bf16.mxu0 0
      %1137 = vmatmul.mubr.bf16.gmra.mrb[0].mxu0 %v1047
      %v1138 = vpop.f32.mrb[0].mxu0
      %v1139 = vadd.f32 %v826, %v1138
      %v1140 = vpop.f32.mrb[0].mxu0
      %v1141 = vpop.f32.mrb[0].mxu0
      %v1142 = vadd.f32 %v829, %v1141
      %v1143 = vpop.f32.mrb[0].mxu0
      %1144 = vmatprep.mubr.bf16.mxu0 0
      %1145 = vmatmul.mubr.bf16.gmra.mrb[0].mxu0 %v1050
      %v1146 = vpop.f32.mrb[0].mxu0
      %v1147 = vadd.f32 %v834, %v1146
      %v1148 = vpop.f32.mrb[0].mxu0
      %v1149 = vpop.f32.mrb[0].mxu0
      %v1150 = vadd.f32 %v837, %v1149
      %v1151 = vpop.f32.mrb[0].mxu0
      %1152 = vmatprep.mubr.bf16.mxu0 0
      %1153 = vmatmul.mubr.bf16.gmra.mrb[0].mxu0 %v1053
      %v1154 = vpop.f32.mrb[0].mxu0
      %v1155 = vadd.f32 %v842, %v1154
      %v1156 = vpop.f32.mrb[0].mxu0
      %v1157 = vpop.f32.mrb[0].mxu0
      %v1158 = vadd.f32 %v845, %v1157
      %v1159 = vpop.f32.mrb[0].mxu0
      %1160 = vmatprep.mubr.bf16.mxu0 0
      %1161 = vmatmul.mubr.bf16.gmra.mrb[0].mxu0 %v1056
      %v1162 = vpop.f32.mrb[0].mxu0
      %v1163 = vadd.f32 %v850, %v1162
      %v1164 = vpop.f32.mrb[0].mxu0
      %v1165 = vpop.f32.mrb[0].mxu0
      %v1166 = vadd.f32 %v853, %v1165
      %v1167 = vpop.f32.mrb[0].mxu0
      %1168 = vmatprep.mubr.bf16.mxu0 0
      %1169 = vmatmul.mubr.bf16.gmra.mrb[0].mxu0 %v1059
      %v1170 = vpop.f32.mrb[0].mxu0
      %v1171 = vadd.f32 %v858, %v1170
      %v1172 = vpop.f32.mrb[0].mxu0
      %v1173 = vpop.f32.mrb[0].mxu0
      %v1174 = vadd.f32 %v861, %v1173
      %v1175 = vpop.f32.mrb[0].mxu0
      %1176 = vmatprep.mubr.bf16.mxu0 0
      %1177 = vmatmul.mubr.bf16.gmra.mrb[0].mxu0 %v1062
      %v1178 = vpop.f32.mrb[0].mxu0
      %v1179 = vadd.f32 %v866, %v1178
      %v1180 = vpop.f32.mrb[0].mxu0
      %v1181 = vpop.f32.mrb[0].mxu0
      %v1182 = vadd.f32 %v869, %v1181
      %v1183 = vpop.f32.mrb[0].mxu0
      %1184 = vmatprep.mubr.bf16.mxu0 0
      %1185 = vmatmul.mubr.bf16.gmra.mrb[0].mxu0 %v1065
      %v1186 = vpop.f32.mrb[0].mxu0
      %v1187 = vadd.f32 %v874, %v1186
      %v1188 = vpop.f32.mrb[0].mxu0
      %v1189 = vpop.f32.mrb[0].mxu0
      %v1190 = vadd.f32 %v877, %v1189
      %v1191 = vpop.f32.mrb[0].mxu0
      %1192 = vmatprep.mubr.bf16.mxu0 0
      %1193 = vmatmul.mubr.bf16.gmra.mrb[0].mxu0 %v1068
      %v1194 = vpop.f32.mrb[0].mxu0
      %v1195 = vadd.f32 %v882, %v1194
      %v1196 = vpop.f32.mrb[0].mxu0
      %v1197 = vpop.f32.mrb[0].mxu0
      %v1198 = vadd.f32 %v885, %v1197
      %v1199 = vpop.f32.mrb[0].mxu0
      %1200 = vmatprep.mubr.bf16.mxu0 0
      %1201 = vmatmul.mubr.bf16.gmra.mrb[0].mxu0 %v1071
      %v1202 = vpop.f32.mrb[0].mxu0
      %v1203 = vadd.f32 %v890, %v1202
      %v1204 = vpop.f32.mrb[0].mxu0
      %v1205 = vpop.f32.mrb[0].mxu0
      %v1206 = vadd.f32 %v893, %v1205
      %v1207 = vpop.f32.mrb[0].mxu0
      %1208 = vmatprep.mubr.bf16.mxu0 0
      %1209 = vmatmul.mubr.bf16.gmra.mrb[0].mxu0 %v1074
      %v1210 = vpop.f32.mrb[0].mxu0
      %v1211 = vadd.f32 %v898, %v1210
      %v1212 = vpop.f32.mrb[0].mxu0
      %v1213 = vpop.f32.mrb[0].mxu0
      %v1214 = vadd.f32 %v901, %v1213
      %v1215 = vpop.f32.mrb[0].mxu0
      %1216 = vmatprep.mubr.bf16.mxu0 0
      %1217 = vmatmul.mubr.bf16.gmra.mrb[0].mxu0 %v1077
      %v1218 = vpop.f32.mrb[0].mxu0
      %v1219 = vadd.f32 %v906, %v1218
      %v1220 = vpop.f32.mrb[0].mxu0
      %v1221 = vpop.f32.mrb[0].mxu0
      %v1222 = vadd.f32 %v909, %v1221
      %v1223 = vpop.f32.mrb[0].mxu0
      %1224 = vmatprep.mubr.bf16.mxu0 0
      %1225 = vmatmul.mubr.bf16.gmra.mrb[0].mxu0 %v1080
      %v1226 = vpop.f32.mrb[0].mxu0
      %v1227 = vadd.f32 %v914, %v1226
      %v1228 = vpop.f32.mrb[0].mxu0
      %v1229 = vpop.f32.mrb[0].mxu0
      %v1230 = vadd.f32 %v917, %v1229
      %v1231 = vpop.f32.mrb[0].mxu0
      %1232 = vmatprep.mubr.bf16.mxu0 0
      %1233 = vmatmul.mubr.bf16.gmra.mrb[0].mxu0 %v1083
      %v1234 = vpop.f32.mrb[0].mxu0
      %v1235 = vadd.f32 %v922, %v1234
      %v1236 = vpop.f32.mrb[0].mxu0
      %v1237 = vpop.f32.mrb[0].mxu0
      %v1238 = vadd.f32 %v925, %v1237
      %v1239 = vpop.f32.mrb[0].mxu0
      %1240 = vmatprep.mubr.bf16.mxu0 0
      %1241 = vmatmul.mubr.bf16.gmra.mrb[0].mxu0 %v1086
      %v1242 = vpop.f32.mrb[0].mxu0
      %v1243 = vadd.f32 %v930, %v1242
      %v1244 = vpop.f32.mrb[0].mxu0
      %v1245 = vpop.f32.mrb[0].mxu0
      %v1246 = vadd.f32 %v933, %v1245
      %v1247 = vpop.f32.mrb[0].mxu0
      %1248 = vdwg.mxu0
      %s1249 = scalar_lea.vmem %s1, 64
      %v1250 = vld [vmem:[%s1249] sm:$0xf]
      %v1251 = vld [vmem:[%s1249 + $0x4] sm:$0xf]
      %v1252 = vld [vmem:[%s1249 + $0x8] sm:$0xf]
      %v1253 = vld [vmem:[%s1249 + $0xc] sm:$0xf]
      %v1254 = vld [vmem:[%s1249 + $0x10] sm:$0xf]
      %v1255 = vld [vmem:[%s1249 + $0x14] sm:$0xf]
      %v1256 = vld [vmem:[%s1249 + $0x18] sm:$0xf]
      %v1257 = vld [vmem:[%s1249 + $0x1c] sm:$0xf]
      %v1260 = vunpack.c.l.b16 %v247
      %v1261 = vunpack.c.l.b16 %v248
      %v1262 = vpack.c.b16 %v1261, %v1260
      %v1271 = vunpack.c.l.b16 %v1250
      %v1272 = vunpack.c.l.b16 %v1251
      %v1273 = vunpack.c.l.b16 %v1252
      %v1274 = vunpack.c.l.b16 %v1253
      %v1275 = vunpack.c.l.b16 %v1254
      %v1276 = vunpack.c.l.b16 %v1255
      %v1277 = vunpack.c.l.b16 %v1256
      %v1278 = vunpack.c.l.b16 %v1257
      %v1279 = vpack.c.b16 %v1272, %v1271
      %v1280 = vpack.c.b16 %v1274, %v1273
      %v1281 = vpack.c.b16 %v1276, %v1275
      %v1282 = vpack.c.b16 %v1278, %v1277
      %v1288 = vsel %vm726, %v1262, 0
      %1290 = vmatprep.subr.bf16.mxu0 0
      %1291 = vmatpush1.bf16.msra.mxu0 %v1279
      %1292 = vmatprep.subr.bf16.mxu0 0
      %1293 = vmatpush1.bf16.msra.mxu0 %v1280
      %1294 = vmatprep.subr.bf16.mxu0 0
      %1295 = vmatpush1.bf16.msra.mxu0 %v1281
      %1296 = vmatprep.subr.bf16.mxu0 0
      %1297 = vmatpush1.bf16.msra.mxu0 %v1282
      %1298 = vmatprep.subr.bf16.mxu0 0
      %1299 = vmatpush1.bf16.msra.mxu0 0
      %1300 = vmatprep.subr.bf16.mxu0 0
      %1301 = vmatpush1.bf16.msra.mxu0 0
      %1302 = vmatprep.subr.bf16.mxu0 0
      %1303 = vmatpush1.bf16.msra.mxu0 0
      %1304 = vmatprep.subr.bf16.mxu0 0
      %1305 = vmatpush1.bf16.msra.mxu0 0
      %1306 = vmatprep.subr.bf16.mxu0 0
      %1307 = vmatpush1.bf16.msra.mxu0 0
      %1308 = vmatprep.subr.bf16.mxu0 0
      %1309 = vmatpush1.bf16.msra.mxu0 0
      %1310 = vmatprep.subr.bf16.mxu0 0
      %1311 = vmatpush1.bf16.msra.mxu0 0
      %1312 = vmatprep.subr.bf16.mxu0 0
      %1313 = vmatpush1.bf16.msra.mxu0 0
      %1314 = vmatprep.subr.bf16.mxu0 0
      %1315 = vmatpush1.bf16.msra.mxu0 0
      %1316 = vmatprep.subr.bf16.mxu0 0
      %1317 = vmatpush1.bf16.msra.mxu0 0
      %1318 = vmatprep.subr.bf16.mxu0 0
      %1319 = vmatpush1.bf16.msra.mxu0 0
      %1320 = vmatprep.subr.bf16.mxu0 0
      %1321 = vmatpush1.bf16.msra.mxu0 0
      %1322 = vmatprep.mubr.bf16.mxu0 0
      %1323 = vmatmul.mubr.bf16.gmra.mrb[0].mxu0 %v1044
      %v1324 = vpop.f32.mrb[0].mxu0
      %v1325 = vadd.f32 0.0, %v1324
      %v1326 = vpop.f32.mrb[0].mxu0
      %v1327 = vpop.f32.mrb[0].mxu0
      %v1328 = vadd.f32 0.0, %v1327
      %v1329 = vpop.f32.mrb[0].mxu0
      %1330 = vmatprep.mubr.bf16.mxu0 0
      %1331 = vmatmul.mubr.bf16.gmra.mrb[0].mxu0 %v1047
      %v1332 = vpop.f32.mrb[0].mxu0
      %v1333 = vadd.f32 0.0, %v1332
      %v1334 = vpop.f32.mrb[0].mxu0
      %v1335 = vpop.f32.mrb[0].mxu0
      %v1336 = vadd.f32 0.0, %v1335
      %v1337 = vpop.f32.mrb[0].mxu0
      %1338 = vmatprep.mubr.bf16.mxu0 0
      %1339 = vmatmul.mubr.bf16.gmra.mrb[0].mxu0 %v1050
      %v1340 = vpop.f32.mrb[0].mxu0
      %v1341 = vadd.f32 0.0, %v1340
      %v1342 = vpop.f32.mrb[0].mxu0
      %v1343 = vpop.f32.mrb[0].mxu0
      %v1344 = vadd.f32 0.0, %v1343
      %v1345 = vpop.f32.mrb[0].mxu0
      %1346 = vmatprep.mubr.bf16.mxu0 0
      %1347 = vmatmul.mubr.bf16.gmra.mrb[0].mxu0 %v1053
      %v1348 = vpop.f32.mrb[0].mxu0
      %v1349 = vadd.f32 0.0, %v1348
      %v1350 = vpop.f32.mrb[0].mxu0
      %v1351 = vpop.f32.mrb[0].mxu0
      %v1352 = vadd.f32 0.0, %v1351
      %v1353 = vpop.f32.mrb[0].mxu0
      %1354 = vmatprep.mubr.bf16.mxu0 0
      %1355 = vmatmul.mubr.bf16.gmra.mrb[0].mxu0 %v1056
      %v1356 = vpop.f32.mrb[0].mxu0
      %v1357 = vadd.f32 0.0, %v1356
      %v1358 = vpop.f32.mrb[0].mxu0
      %v1359 = vpop.f32.mrb[0].mxu0
      %v1360 = vadd.f32 0.0, %v1359
      %v1361 = vpop.f32.mrb[0].mxu0
      %1362 = vmatprep.mubr.bf16.mxu0 0
      %1363 = vmatmul.mubr.bf16.gmra.mrb[0].mxu0 %v1059
      %v1364 = vpop.f32.mrb[0].mxu0
      %v1365 = vadd.f32 0.0, %v1364
      %v1366 = vpop.f32.mrb[0].mxu0
      %v1367 = vpop.f32.mrb[0].mxu0
      %v1368 = vadd.f32 0.0, %v1367
      %v1369 = vpop.f32.mrb[0].mxu0
      %1370 = vmatprep.mubr.bf16.mxu0 0
      %1371 = vmatmul.mubr.bf16.gmra.mrb[0].mxu0 %v1062
      %v1372 = vpop.f32.mrb[0].mxu0
      %v1373 = vadd.f32 0.0, %v1372
      %v1374 = vpop.f32.mrb[0].mxu0
      %v1375 = vpop.f32.mrb[0].mxu0
      %v1376 = vadd.f32 0.0, %v1375
      %v1377 = vpop.f32.mrb[0].mxu0
      %1378 = vmatprep.mubr.bf16.mxu0 0
      %1379 = vmatmul.mubr.bf16.gmra.mrb[0].mxu0 %v1065
      %v1380 = vpop.f32.mrb[0].mxu0
      %v1381 = vadd.f32 0.0, %v1380
      %v1382 = vpop.f32.mrb[0].mxu0
      %v1383 = vpop.f32.mrb[0].mxu0
      %v1384 = vadd.f32 0.0, %v1383
      %v1385 = vpop.f32.mrb[0].mxu0
      %1386 = vmatprep.mubr.bf16.mxu0 0
      %1387 = vmatmul.mubr.bf16.gmra.mrb[0].mxu0 %v1068
      %v1388 = vpop.f32.mrb[0].mxu0
      %v1389 = vadd.f32 0.0, %v1388
      %v1390 = vpop.f32.mrb[0].mxu0
      %v1391 = vpop.f32.mrb[0].mxu0
      %v1392 = vadd.f32 0.0, %v1391
      %v1393 = vpop.f32.mrb[0].mxu0
      %1394 = vmatprep.mubr.bf16.mxu0 0
      %1395 = vmatmul.mubr.bf16.gmra.mrb[0].mxu0 %v1071
      %v1396 = vpop.f32.mrb[0].mxu0
      %v1397 = vadd.f32 0.0, %v1396
      %v1398 = vpop.f32.mrb[0].mxu0
      %v1399 = vpop.f32.mrb[0].mxu0
      %v1400 = vadd.f32 0.0, %v1399
      %v1401 = vpop.f32.mrb[0].mxu0
      %1402 = vmatprep.mubr.bf16.mxu0 0
      %1403 = vmatmul.mubr.bf16.gmra.mrb[0].mxu0 %v1074
      %v1404 = vpop.f32.mrb[0].mxu0
      %v1405 = vadd.f32 0.0, %v1404
      %v1406 = vpop.f32.mrb[0].mxu0
      %v1407 = vpop.f32.mrb[0].mxu0
      %v1408 = vadd.f32 0.0, %v1407
      %v1409 = vpop.f32.mrb[0].mxu0
      %1410 = vmatprep.mubr.bf16.mxu0 0
      %1411 = vmatmul.mubr.bf16.gmra.mrb[0].mxu0 %v1077
      %v1412 = vpop.f32.mrb[0].mxu0
      %v1413 = vadd.f32 0.0, %v1412
      %v1414 = vpop.f32.mrb[0].mxu0
      %v1415 = vpop.f32.mrb[0].mxu0
      %v1416 = vadd.f32 0.0, %v1415
      %v1417 = vpop.f32.mrb[0].mxu0
      %1418 = vmatprep.mubr.bf16.mxu0 0
      %1419 = vmatmul.mubr.bf16.gmra.mrb[0].mxu0 %v1080
      %v1420 = vpop.f32.mrb[0].mxu0
      %v1421 = vadd.f32 0.0, %v1420
      %v1422 = vpop.f32.mrb[0].mxu0
      %v1423 = vpop.f32.mrb[0].mxu0
      %v1424 = vadd.f32 0.0, %v1423
      %v1425 = vpop.f32.mrb[0].mxu0
      %1426 = vmatprep.mubr.bf16.mxu0 0
      %1427 = vmatmul.mubr.bf16.gmra.mrb[0].mxu0 %v1083
      %v1428 = vpop.f32.mrb[0].mxu0
      %v1429 = vadd.f32 0.0, %v1428
      %v1430 = vpop.f32.mrb[0].mxu0
      %v1431 = vpop.f32.mrb[0].mxu0
      %v1432 = vadd.f32 0.0, %v1431
      %v1433 = vpop.f32.mrb[0].mxu0
      %1434 = vmatprep.mubr.bf16.mxu0 0
      %1435 = vmatmul.mubr.bf16.gmra.mrb[0].mxu0 %v1086
      %v1436 = vpop.f32.mrb[0].mxu0
      %v1437 = vadd.f32 0.0, %v1436
      %v1438 = vpop.f32.mrb[0].mxu0
      %v1439 = vpop.f32.mrb[0].mxu0
      %v1440 = vadd.f32 0.0, %v1439
      %v1441 = vpop.f32.mrb[0].mxu0
      %1442 = vmatprep.mubr.bf16.mxu0 0
      %1443 = vmatmul.mubr.bf16.gmra.mrb[0].mxu0 %v1288
      %v1444 = vpop.f32.mrb[0].mxu0
      %v1445 = vadd.f32 0.0, %v1444
      %v1446 = vpop.f32.mrb[0].mxu0
      %v1447 = vpop.f32.mrb[0].mxu0
      %v1448 = vadd.f32 0.0, %v1447
      %v1449 = vpop.f32.mrb[0].mxu0
      %1450 = vdwg.mxu0
      %v1451 = vadd.f32 %v1123, %v1325
      %v1452 = vadd.f32 %v1126, %v1328
      %v1453 = vadd.f32 %v1131, %v1333
      %v1454 = vadd.f32 %v1134, %v1336
      %v1455 = vadd.f32 %v1139, %v1341
      %v1456 = vadd.f32 %v1142, %v1344
      %v1457 = vadd.f32 %v1147, %v1349
      %v1458 = vadd.f32 %v1150, %v1352
      %v1459 = vadd.f32 %v1155, %v1357
      %v1460 = vadd.f32 %v1158, %v1360
      %v1461 = vadd.f32 %v1163, %v1365
      %v1462 = vadd.f32 %v1166, %v1368
      %v1463 = vadd.f32 %v1171, %v1373
      %v1464 = vadd.f32 %v1174, %v1376
      %v1465 = vadd.f32 %v1179, %v1381
      %v1466 = vadd.f32 %v1182, %v1384
      %v1467 = vadd.f32 %v1187, %v1389
      %v1468 = vadd.f32 %v1190, %v1392
      %v1469 = vadd.f32 %v1195, %v1397
      %v1470 = vadd.f32 %v1198, %v1400
      %v1471 = vadd.f32 %v1203, %v1405
      %v1472 = vadd.f32 %v1206, %v1408
      %v1473 = vadd.f32 %v1211, %v1413
      %v1474 = vadd.f32 %v1214, %v1416
      %v1475 = vadd.f32 %v1219, %v1421
      %v1476 = vadd.f32 %v1222, %v1424
      %v1477 = vadd.f32 %v1227, %v1429
      %v1478 = vadd.f32 %v1230, %v1432
      %v1479 = vadd.f32 %v1235, %v1437
      %v1480 = vadd.f32 %v1238, %v1440
      %v1481 = vadd.f32 %v1243, %v1445
      %v1482 = vadd.f32 %v1246, %v1448
      %v1484 = vshrl.u32 %v247, 16
      %v1486 = vrot.slane %v1484, 4
      %v1487 = vshll.u32 %v247, 16
      %v1489 = vrot.slane %v1487, 5
      %v1490 = vor.u32 %v1486, %v1489
      %v1491 = vrot.slane %v1490, 4
      %v1493 = vshll.u32 %v248, 16
      %v1495 = vrot.slane %v1493, 5
      %v1496 = vsel %vm260, %v1491, %v1495
      %v1497 = vshrl.u32 %v248, 16
      %v1499 = vrot.slane %v1497, 4
      %v1500 = vor.u32 %v1499, %v1495
      %v1501 = vrot.slane %v1500, 4
      %v1503 = vshll.u32 %v249, 16
      %v1505 = vrot.slane %v1503, 5
      %v1506 = vsel %vm260, %v1501, %v1505
      %s1507 = scalar_lea.vmem %s1, 96
      %v1508 = vld [vmem:[%s1507] sm:$0xf]
      %v1509 = vld [vmem:[%s1507 + $0x4] sm:$0xf]
      %v1510 = vld [vmem:[%s1507 + $0x8] sm:$0xf]
      %v1511 = vld [vmem:[%s1507 + $0xc] sm:$0xf]
      %v1512 = vld [vmem:[%s1507 + $0x10] sm:$0xf]
      %v1513 = vld [vmem:[%s1507 + $0x14] sm:$0xf]
      %v1514 = vld [vmem:[%s1507 + $0x18] sm:$0xf]
      %v1515 = vld [vmem:[%s1507 + $0x1c] sm:$0xf]
      %v1516 = vunpack.c.l.b16 %v1496
      %v1517 = vunpack.c.l.b16 %v1506
      %v1518 = vpack.c.b16 %v1517, %v1516
      %v1527 = vunpack.c.l.b16 %v1508
      %v1528 = vunpack.c.l.b16 %v1509
      %v1529 = vunpack.c.l.b16 %v1510
      %v1530 = vunpack.c.l.b16 %v1511
      %v1531 = vunpack.c.l.b16 %v1512
      %v1532 = vunpack.c.l.b16 %v1513
      %v1533 = vunpack.c.l.b16 %v1514
      %v1534 = vunpack.c.l.b16 %v1515
      %v1535 = vpack.c.b16 %v1528, %v1527
      %v1536 = vpack.c.b16 %v1530, %v1529
      %v1537 = vpack.c.b16 %v1532, %v1531
      %v1538 = vpack.c.b16 %v1534, %v1533
      %v1544 = vsel %vm726, %v1518, 0
      %1546 = vmatprep.subr.bf16.mxu0 0
      %1547 = vmatpush1.bf16.msra.mxu0 %v1535
      %1548 = vmatprep.subr.bf16.mxu0 0
      %1549 = vmatpush1.bf16.msra.mxu0 %v1536
      %1550 = vmatprep.subr.bf16.mxu0 0
      %1551 = vmatpush1.bf16.msra.mxu0 %v1537
      %1552 = vmatprep.subr.bf16.mxu0 0
      %1553 = vmatpush1.bf16.msra.mxu0 %v1538
      %1554 = vmatprep.subr.bf16.mxu0 0
      %1555 = vmatpush1.bf16.msra.mxu0 0
      %1556 = vmatprep.subr.bf16.mxu0 0
      %1557 = vmatpush1.bf16.msra.mxu0 0
      %1558 = vmatprep.subr.bf16.mxu0 0
      %1559 = vmatpush1.bf16.msra.mxu0 0
      %1560 = vmatprep.subr.bf16.mxu0 0
      %1561 = vmatpush1.bf16.msra.mxu0 0
      %1562 = vmatprep.subr.bf16.mxu0 0
      %1563 = vmatpush1.bf16.msra.mxu0 0
      %1564 = vmatprep.subr.bf16.mxu0 0
      %1565 = vmatpush1.bf16.msra.mxu0 0
      %1566 = vmatprep.subr.bf16.mxu0 0
      %1567 = vmatpush1.bf16.msra.mxu0 0
      %1568 = vmatprep.subr.bf16.mxu0 0
      %1569 = vmatpush1.bf16.msra.mxu0 0
      %1570 = vmatprep.subr.bf16.mxu0 0
      %1571 = vmatpush1.bf16.msra.mxu0 0
      %1572 = vmatprep.subr.bf16.mxu0 0
      %1573 = vmatpush1.bf16.msra.mxu0 0
      %1574 = vmatprep.subr.bf16.mxu0 0
      %1575 = vmatpush1.bf16.msra.mxu0 0
      %1576 = vmatprep.subr.bf16.mxu0 0
      %1577 = vmatpush1.bf16.msra.mxu0 0
      %1578 = vmatprep.mubr.bf16.mxu0 0
      %1579 = vmatmul.mubr.bf16.gmra.mrb[0].mxu0 %v731
      %v1580 = vpop.f32.mrb[0].mxu0
      %v1581 = vadd.f32 0.0, %v1580
      %v1582 = vpop.f32.mrb[0].mxu0
      %v1583 = vpop.f32.mrb[0].mxu0
      %v1584 = vadd.f32 0.0, %v1583
      %v1585 = vpop.f32.mrb[0].mxu0
      %1586 = vmatprep.mubr.bf16.mxu0 0
      %1587 = vmatmul.mubr.bf16.gmra.mrb[0].mxu0 %v734
      %v1588 = vpop.f32.mrb[0].mxu0
      %v1589 = vadd.f32 0.0, %v1588
      %v1590 = vpop.f32.mrb[0].mxu0
      %v1591 = vpop.f32.mrb[0].mxu0
      %v1592 = vadd.f32 0.0, %v1591
      %v1593 = vpop.f32.mrb[0].mxu0
      %1594 = vmatprep.mubr.bf16.mxu0 0
      %1595 = vmatmul.mubr.bf16.gmra.mrb[0].mxu0 %v737
      %v1596 = vpop.f32.mrb[0].mxu0
      %v1597 = vadd.f32 0.0, %v1596
      %v1598 = vpop.f32.mrb[0].mxu0
      %v1599 = vpop.f32.mrb[0].mxu0
      %v1600 = vadd.f32 0.0, %v1599
      %v1601 = vpop.f32.mrb[0].mxu0
      %1602 = vmatprep.mubr.bf16.mxu0 0
      %1603 = vmatmul.mubr.bf16.gmra.mrb[0].mxu0 %v740
      %v1604 = vpop.f32.mrb[0].mxu0
      %v1605 = vadd.f32 0.0, %v1604
      %v1606 = vpop.f32.mrb[0].mxu0
      %v1607 = vpop.f32.mrb[0].mxu0
      %v1608 = vadd.f32 0.0, %v1607
      %v1609 = vpop.f32.mrb[0].mxu0
      %1610 = vmatprep.mubr.bf16.mxu0 0
      %1611 = vmatmul.mubr.bf16.gmra.mrb[0].mxu0 %v743
      %v1612 = vpop.f32.mrb[0].mxu0
      %v1613 = vadd.f32 0.0, %v1612
      %v1614 = vpop.f32.mrb[0].mxu0
      %v1615 = vpop.f32.mrb[0].mxu0
      %v1616 = vadd.f32 0.0, %v1615
      %v1617 = vpop.f32.mrb[0].mxu0
      %1618 = vmatprep.mubr.bf16.mxu0 0
      %1619 = vmatmul.mubr.bf16.gmra.mrb[0].mxu0 %v746
      %v1620 = vpop.f32.mrb[0].mxu0
      %v1621 = vadd.f32 0.0, %v1620
      %v1622 = vpop.f32.mrb[0].mxu0
      %v1623 = vpop.f32.mrb[0].mxu0
      %v1624 = vadd.f32 0.0, %v1623
      %v1625 = vpop.f32.mrb[0].mxu0
      %1626 = vmatprep.mubr.bf16.mxu0 0
      %1627 = vmatmul.mubr.bf16.gmra.mrb[0].mxu0 %v749
      %v1628 = vpop.f32.mrb[0].mxu0
      %v1629 = vadd.f32 0.0, %v1628
      %v1630 = vpop.f32.mrb[0].mxu0
      %v1631 = vpop.f32.mrb[0].mxu0
      %v1632 = vadd.f32 0.0, %v1631
      %v1633 = vpop.f32.mrb[0].mxu0
      %1634 = vmatprep.mubr.bf16.mxu0 0
      %1635 = vmatmul.mubr.bf16.gmra.mrb[0].mxu0 %v752
      %v1636 = vpop.f32.mrb[0].mxu0
      %v1637 = vadd.f32 0.0, %v1636
      %v1638 = vpop.f32.mrb[0].mxu0
      %v1639 = vpop.f32.mrb[0].mxu0
      %v1640 = vadd.f32 0.0, %v1639
      %v1641 = vpop.f32.mrb[0].mxu0
      %1642 = vmatprep.mubr.bf16.mxu0 0
      %1643 = vmatmul.mubr.bf16.gmra.mrb[0].mxu0 %v755
      %v1644 = vpop.f32.mrb[0].mxu0
      %v1645 = vadd.f32 0.0, %v1644
      %v1646 = vpop.f32.mrb[0].mxu0
      %v1647 = vpop.f32.mrb[0].mxu0
      %v1648 = vadd.f32 0.0, %v1647
      %v1649 = vpop.f32.mrb[0].mxu0
      %1650 = vmatprep.mubr.bf16.mxu0 0
      %1651 = vmatmul.mubr.bf16.gmra.mrb[0].mxu0 %v758
      %v1652 = vpop.f32.mrb[0].mxu0
      %v1653 = vadd.f32 0.0, %v1652
      %v1654 = vpop.f32.mrb[0].mxu0
      %v1655 = vpop.f32.mrb[0].mxu0
      %v1656 = vadd.f32 0.0, %v1655
      %v1657 = vpop.f32.mrb[0].mxu0
      %1658 = vmatprep.mubr.bf16.mxu0 0
      %1659 = vmatmul.mubr.bf16.gmra.mrb[0].mxu0 %v761
      %v1660 = vpop.f32.mrb[0].mxu0
      %v1661 = vadd.f32 0.0, %v1660
      %v1662 = vpop.f32.mrb[0].mxu0
      %v1663 = vpop.f32.mrb[0].mxu0
      %v1664 = vadd.f32 0.0, %v1663
      %v1665 = vpop.f32.mrb[0].mxu0
      %1666 = vmatprep.mubr.bf16.mxu0 0
      %1667 = vmatmul.mubr.bf16.gmra.mrb[0].mxu0 %v764
      %v1668 = vpop.f32.mrb[0].mxu0
      %v1669 = vadd.f32 0.0, %v1668
      %v1670 = vpop.f32.mrb[0].mxu0
      %v1671 = vpop.f32.mrb[0].mxu0
      %v1672 = vadd.f32 0.0, %v1671
      %v1673 = vpop.f32.mrb[0].mxu0
      %1674 = vmatprep.mubr.bf16.mxu0 0
      %1675 = vmatmul.mubr.bf16.gmra.mrb[0].mxu0 %v767
      %v1676 = vpop.f32.mrb[0].mxu0
      %v1677 = vadd.f32 0.0, %v1676
      %v1678 = vpop.f32.mrb[0].mxu0
      %v1679 = vpop.f32.mrb[0].mxu0
      %v1680 = vadd.f32 0.0, %v1679
      %v1681 = vpop.f32.mrb[0].mxu0
      %1682 = vmatprep.mubr.bf16.mxu0 0
      %1683 = vmatmul.mubr.bf16.gmra.mrb[0].mxu0 %v770
      %v1684 = vpop.f32.mrb[0].mxu0
      %v1685 = vadd.f32 0.0, %v1684
      %v1686 = vpop.f32.mrb[0].mxu0
      %v1687 = vpop.f32.mrb[0].mxu0
      %v1688 = vadd.f32 0.0, %v1687
      %v1689 = vpop.f32.mrb[0].mxu0
      %1690 = vmatprep.mubr.bf16.mxu0 0
      %1691 = vmatmul.mubr.bf16.gmra.mrb[0].mxu0 %v773
      %v1692 = vpop.f32.mrb[0].mxu0
      %v1693 = vadd.f32 0.0, %v1692
      %v1694 = vpop.f32.mrb[0].mxu0
      %v1695 = vpop.f32.mrb[0].mxu0
      %v1696 = vadd.f32 0.0, %v1695
      %v1697 = vpop.f32.mrb[0].mxu0
      %1698 = vmatprep.mubr.bf16.mxu0 0
      %1699 = vmatmul.mubr.bf16.gmra.mrb[0].mxu0 %v1544
      %v1700 = vpop.f32.mrb[0].mxu0
      %v1701 = vadd.f32 0.0, %v1700
      %v1702 = vpop.f32.mrb[0].mxu0
      %v1703 = vpop.f32.mrb[0].mxu0
      %v1704 = vadd.f32 0.0, %v1703
      %v1705 = vpop.f32.mrb[0].mxu0
      %1706 = vdwg.mxu0
      %v1707 = vadd.f32 %v1451, %v1581
      %v1708 = vadd.f32 %v1452, %v1584
      %v1709 = vadd.f32 %v1453, %v1589
      %v1710 = vadd.f32 %v1454, %v1592
      %v1711 = vadd.f32 %v1455, %v1597
      %v1712 = vadd.f32 %v1456, %v1600
      %v1713 = vadd.f32 %v1457, %v1605
      %v1714 = vadd.f32 %v1458, %v1608
      %v1715 = vadd.f32 %v1459, %v1613
      %v1716 = vadd.f32 %v1460, %v1616
      %v1717 = vadd.f32 %v1461, %v1621
      %v1718 = vadd.f32 %v1462, %v1624
      %v1719 = vadd.f32 %v1463, %v1629
      %v1720 = vadd.f32 %v1464, %v1632
      %v1721 = vadd.f32 %v1465, %v1637
      %v1722 = vadd.f32 %v1466, %v1640
      %v1723 = vadd.f32 %v1467, %v1645
      %v1724 = vadd.f32 %v1468, %v1648
      %v1725 = vadd.f32 %v1469, %v1653
      %v1726 = vadd.f32 %v1470, %v1656
      %v1727 = vadd.f32 %v1471, %v1661
      %v1728 = vadd.f32 %v1472, %v1664
      %v1729 = vadd.f32 %v1473, %v1669
      %v1730 = vadd.f32 %v1474, %v1672
      %v1731 = vadd.f32 %v1475, %v1677
      %v1732 = vadd.f32 %v1476, %v1680
      %v1733 = vadd.f32 %v1477, %v1685
      %v1734 = vadd.f32 %v1478, %v1688
      %v1735 = vadd.f32 %v1479, %v1693
      %v1736 = vadd.f32 %v1480, %v1696
      %v1737 = vadd.f32 %v1481, %v1701
      %v1738 = vadd.f32 %v1482, %v1704
      %vm1739 = vcmask 261120
      %v1740 = vsel %vm1739, %v1707, 0.0
      %v1741 = vsel %vm1739, %v1708, 0.0
      %v1742 = vadd.f32 %v1740, %v1741
      %v1743 = vsel %vm1739, %v1709, 0.0
      %v1744 = vadd.f32 %v1742, %v1743
      %v1745 = vsel %vm1739, %v1710, 0.0
      %v1746 = vadd.f32 %v1744, %v1745
      %v1747 = vsel %vm1739, %v1711, 0.0
      %v1748 = vadd.f32 %v1746, %v1747
      %v1749 = vsel %vm1739, %v1712, 0.0
      %v1750 = vadd.f32 %v1748, %v1749
      %v1751 = vsel %vm1739, %v1713, 0.0
      %v1752 = vadd.f32 %v1750, %v1751
      %v1753 = vsel %vm1739, %v1714, 0.0
      %v1754 = vadd.f32 %v1752, %v1753
      %v1755 = vsel %vm1739, %v1715, 0.0
      %v1756 = vadd.f32 %v1754, %v1755
      %v1757 = vsel %vm1739, %v1716, 0.0
      %v1758 = vadd.f32 %v1756, %v1757
      %v1759 = vsel %vm1739, %v1717, 0.0
      %v1760 = vadd.f32 %v1758, %v1759
      %v1761 = vsel %vm1739, %v1718, 0.0
      %v1762 = vadd.f32 %v1760, %v1761
      %v1763 = vsel %vm1739, %v1719, 0.0
      %v1764 = vadd.f32 %v1762, %v1763
      %v1765 = vsel %vm1739, %v1720, 0.0
      %v1766 = vadd.f32 %v1764, %v1765
      %v1767 = vsel %vm1739, %v1721, 0.0
      %v1768 = vadd.f32 %v1766, %v1767
      %v1769 = vsel %vm1739, %v1722, 0.0
      %v1770 = vadd.f32 %v1768, %v1769
      %v1771 = vsel %vm1739, %v1723, 0.0
      %v1772 = vadd.f32 %v1770, %v1771
      %v1773 = vsel %vm1739, %v1724, 0.0
      %v1774 = vadd.f32 %v1772, %v1773
      %v1775 = vsel %vm1739, %v1725, 0.0
      %v1776 = vadd.f32 %v1774, %v1775
      %v1777 = vsel %vm1739, %v1726, 0.0
      %v1778 = vadd.f32 %v1776, %v1777
      %v1779 = vsel %vm1739, %v1727, 0.0
      %v1780 = vadd.f32 %v1778, %v1779
      %v1781 = vsel %vm1739, %v1728, 0.0
      %v1782 = vadd.f32 %v1780, %v1781
      %v1783 = vsel %vm1739, %v1729, 0.0
      %v1784 = vadd.f32 %v1782, %v1783
      %v1785 = vsel %vm1739, %v1730, 0.0
      %v1786 = vadd.f32 %v1784, %v1785
      %v1787 = vsel %vm1739, %v1731, 0.0
      %v1788 = vadd.f32 %v1786, %v1787
      %v1789 = vsel %vm1739, %v1732, 0.0
      %v1790 = vadd.f32 %v1788, %v1789
      %v1791 = vsel %vm1739, %v1733, 0.0
      %v1792 = vadd.f32 %v1790, %v1791
      %v1793 = vsel %vm1739, %v1734, 0.0
      %v1794 = vadd.f32 %v1792, %v1793
      %v1795 = vsel %vm1739, %v1735, 0.0
      %v1796 = vadd.f32 %v1794, %v1795
      %v1797 = vsel %vm1739, %v1736, 0.0
      %v1798 = vadd.f32 %v1796, %v1797
      %v1799 = vsel %vm1739, %v1737, 0.0
      %v1800 = vadd.f32 %v1798, %v1799
      %v1801 = vsel %vm1739, %v1738, 0.0
      %v1802 = vadd.f32 %v1800, %v1801
      %v1803 = vrot.slane %v1802, 4
      %v1804 = vadd.f32 %v1802, %v1803
      %v1805 = vrot.slane %v1804, 2
      %v1806 = vadd.f32 %v1804, %v1805
      %v1807 = vrot.slane %v1806, 1
      %v1808 = vadd.f32 %v1806, %v1807
      %v1809 = vrcp.pop 256.0
      %v1810 = vmul.f32 %v1808, %v1809
      %v1811 = vsub.f32 %v1707, %v1810
      %v1812 = vsub.f32 %v1708, %v1810
      %v1813 = vsub.f32 %v1709, %v1810
      %v1814 = vsub.f32 %v1710, %v1810
      %v1815 = vsub.f32 %v1711, %v1810
      %v1816 = vsub.f32 %v1712, %v1810
      %v1817 = vsub.f32 %v1713, %v1810
      %v1818 = vsub.f32 %v1714, %v1810
      %v1819 = vsub.f32 %v1715, %v1810
      %v1820 = vsub.f32 %v1716, %v1810
      %v1821 = vsub.f32 %v1717, %v1810
      %v1822 = vsub.f32 %v1718, %v1810
      %v1823 = vsub.f32 %v1719, %v1810
      %v1824 = vsub.f32 %v1720, %v1810
      %v1825 = vsub.f32 %v1721, %v1810
      %v1826 = vsub.f32 %v1722, %v1810
      %v1827 = vsub.f32 %v1723, %v1810
      %v1828 = vsub.f32 %v1724, %v1810
      %v1829 = vsub.f32 %v1725, %v1810
      %v1830 = vsub.f32 %v1726, %v1810
      %v1831 = vsub.f32 %v1727, %v1810
      %v1832 = vsub.f32 %v1728, %v1810
      %v1833 = vsub.f32 %v1729, %v1810
      %v1834 = vsub.f32 %v1730, %v1810
      %v1835 = vsub.f32 %v1731, %v1810
      %v1836 = vsub.f32 %v1732, %v1810
      %v1837 = vsub.f32 %v1733, %v1810
      %v1838 = vsub.f32 %v1734, %v1810
      %v1839 = vsub.f32 %v1735, %v1810
      %v1840 = vsub.f32 %v1736, %v1810
      %v1841 = vsub.f32 %v1737, %v1810
      %v1842 = vsub.f32 %v1738, %v1810
      %v1843 = vmul.f32 %v1811, %v1811
      %v1844 = vmul.f32 %v1812, %v1812
      %v1845 = vmul.f32 %v1813, %v1813
      %v1846 = vmul.f32 %v1814, %v1814
      %v1847 = vmul.f32 %v1815, %v1815
      %v1848 = vmul.f32 %v1816, %v1816
      %v1849 = vmul.f32 %v1817, %v1817
      %v1850 = vmul.f32 %v1818, %v1818
      %v1851 = vmul.f32 %v1819, %v1819
      %v1852 = vmul.f32 %v1820, %v1820
      %v1853 = vmul.f32 %v1821, %v1821
      %v1854 = vmul.f32 %v1822, %v1822
      %v1855 = vmul.f32 %v1823, %v1823
      %v1856 = vmul.f32 %v1824, %v1824
      %v1857 = vmul.f32 %v1825, %v1825
      %v1858 = vmul.f32 %v1826, %v1826
      %v1859 = vmul.f32 %v1827, %v1827
      %v1860 = vmul.f32 %v1828, %v1828
      %v1861 = vmul.f32 %v1829, %v1829
      %v1862 = vmul.f32 %v1830, %v1830
      %v1863 = vmul.f32 %v1831, %v1831
      %v1864 = vmul.f32 %v1832, %v1832
      %v1865 = vmul.f32 %v1833, %v1833
      %v1866 = vmul.f32 %v1834, %v1834
      %v1867 = vmul.f32 %v1835, %v1835
      %v1868 = vmul.f32 %v1836, %v1836
      %v1869 = vmul.f32 %v1837, %v1837
      %v1870 = vmul.f32 %v1838, %v1838
      %v1871 = vmul.f32 %v1839, %v1839
      %v1872 = vmul.f32 %v1840, %v1840
      %v1873 = vmul.f32 %v1841, %v1841
      %v1874 = vmul.f32 %v1842, %v1842
      %v1875 = vsel %vm1739, %v1843, 0.0
      %v1876 = vsel %vm1739, %v1844, 0.0
      %v1877 = vadd.f32 %v1875, %v1876
      %v1878 = vsel %vm1739, %v1845, 0.0
      %v1879 = vadd.f32 %v1877, %v1878
      %v1880 = vsel %vm1739, %v1846, 0.0
      %v1881 = vadd.f32 %v1879, %v1880
      %v1882 = vsel %vm1739, %v1847, 0.0
      %v1883 = vadd.f32 %v1881, %v1882
      %v1884 = vsel %vm1739, %v1848, 0.0
      %v1885 = vadd.f32 %v1883, %v1884
      %v1886 = vsel %vm1739, %v1849, 0.0
      %v1887 = vadd.f32 %v1885, %v1886
      %v1888 = vsel %vm1739, %v1850, 0.0
      %v1889 = vadd.f32 %v1887, %v1888
      %v1890 = vsel %vm1739, %v1851, 0.0
      %v1891 = vadd.f32 %v1889, %v1890
      %v1892 = vsel %vm1739, %v1852, 0.0
      %v1893 = vadd.f32 %v1891, %v1892
      %v1894 = vsel %vm1739, %v1853, 0.0
      %v1895 = vadd.f32 %v1893, %v1894
      %v1896 = vsel %vm1739, %v1854, 0.0
      %v1897 = vadd.f32 %v1895, %v1896
      %v1898 = vsel %vm1739, %v1855, 0.0
      %v1899 = vadd.f32 %v1897, %v1898
      %v1900 = vsel %vm1739, %v1856, 0.0
      %v1901 = vadd.f32 %v1899, %v1900
      %v1902 = vsel %vm1739, %v1857, 0.0
      %v1903 = vadd.f32 %v1901, %v1902
      %v1904 = vsel %vm1739, %v1858, 0.0
      %v1905 = vadd.f32 %v1903, %v1904
      %v1906 = vsel %vm1739, %v1859, 0.0
      %v1907 = vadd.f32 %v1905, %v1906
      %v1908 = vsel %vm1739, %v1860, 0.0
      %v1909 = vadd.f32 %v1907, %v1908
      %v1910 = vsel %vm1739, %v1861, 0.0
      %v1911 = vadd.f32 %v1909, %v1910
      %v1912 = vsel %vm1739, %v1862, 0.0
      %v1913 = vadd.f32 %v1911, %v1912
      %v1914 = vsel %vm1739, %v1863, 0.0
      %v1915 = vadd.f32 %v1913, %v1914
      %v1916 = vsel %vm1739, %v1864, 0.0
      %v1917 = vadd.f32 %v1915, %v1916
      %v1918 = vsel %vm1739, %v1865, 0.0
      %v1919 = vadd.f32 %v1917, %v1918
      %v1920 = vsel %vm1739, %v1866, 0.0
      %v1921 = vadd.f32 %v1919, %v1920
      %v1922 = vsel %vm1739, %v1867, 0.0
      %v1923 = vadd.f32 %v1921, %v1922
      %v1924 = vsel %vm1739, %v1868, 0.0
      %v1925 = vadd.f32 %v1923, %v1924
      %v1926 = vsel %vm1739, %v1869, 0.0
      %v1927 = vadd.f32 %v1925, %v1926
      %v1928 = vsel %vm1739, %v1870, 0.0
      %v1929 = vadd.f32 %v1927, %v1928
      %v1930 = vsel %vm1739, %v1871, 0.0
      %v1931 = vadd.f32 %v1929, %v1930
      %v1932 = vsel %vm1739, %v1872, 0.0
      %v1933 = vadd.f32 %v1931, %v1932
      %v1934 = vsel %vm1739, %v1873, 0.0
      %v1935 = vadd.f32 %v1933, %v1934
      %v1936 = vsel %vm1739, %v1874, 0.0
      %v1937 = vadd.f32 %v1935, %v1936
      %v1938 = vrot.slane %v1937, 4
      %v1939 = vadd.f32 %v1937, %v1938
      %v1940 = vrot.slane %v1939, 2
      %v1941 = vadd.f32 %v1939, %v1940
      %v1942 = vrot.slane %v1941, 1
      %v1943 = vadd.f32 %v1941, %v1942
      %v1944 = vmul.f32 %v1943, %v1809
      %v1945 = vadd.f32 %v1944, 1e-05
      %v1946 = vrsqrt.pop %v1945
      %v1947 = vmul.f32 %v1811, %v1946
      %v1948 = vmul.f32 %v1812, %v1946
      %v1949 = vmul.f32 %v1813, %v1946
      %v1950 = vmul.f32 %v1814, %v1946
      %v1951 = vmul.f32 %v1815, %v1946
      %v1952 = vmul.f32 %v1816, %v1946
      %v1953 = vmul.f32 %v1817, %v1946
      %v1954 = vmul.f32 %v1818, %v1946
      %v1955 = vmul.f32 %v1819, %v1946
      %v1956 = vmul.f32 %v1820, %v1946
      %v1957 = vmul.f32 %v1821, %v1946
      %v1958 = vmul.f32 %v1822, %v1946
      %v1959 = vmul.f32 %v1823, %v1946
      %v1960 = vmul.f32 %v1824, %v1946
      %v1961 = vmul.f32 %v1825, %v1946
      %v1962 = vmul.f32 %v1826, %v1946
      %v1963 = vmul.f32 %v1827, %v1946
      %v1964 = vmul.f32 %v1828, %v1946
      %v1965 = vmul.f32 %v1829, %v1946
      %v1966 = vmul.f32 %v1830, %v1946
      %v1967 = vmul.f32 %v1831, %v1946
      %v1968 = vmul.f32 %v1832, %v1946
      %v1969 = vmul.f32 %v1833, %v1946
      %v1970 = vmul.f32 %v1834, %v1946
      %v1971 = vmul.f32 %v1835, %v1946
      %v1972 = vmul.f32 %v1836, %v1946
      %v1973 = vmul.f32 %v1837, %v1946
      %v1974 = vmul.f32 %v1838, %v1946
      %v1975 = vmul.f32 %v1839, %v1946
      %v1976 = vmul.f32 %v1840, %v1946
      %v1977 = vmul.f32 %v1841, %v1946
      %v1978 = vmul.f32 %v1842, %v1946
      %v1979 = vld [vmem:[%s2] sm:$0x1]
      %v1981 = vlaneseq
      %v1982 = vshrl.u32 %v1981, 7
      %v1983 = vsub.s32 0, %v1982
      %v1984 = vrot.slane %v1979, %v1983
      %v1986 = vmul.f32 %v1947, %v1984
      %v1987 = vmul.f32 %v1948, %v1984
      %v1988 = vmul.f32 %v1949, %v1984
      %v1989 = vmul.f32 %v1950, %v1984
      %v1990 = vmul.f32 %v1951, %v1984
      %v1991 = vmul.f32 %v1952, %v1984
      %v1992 = vmul.f32 %v1953, %v1984
      %v1993 = vmul.f32 %v1954, %v1984
      %v1994 = vmul.f32 %v1955, %v1984
      %v1995 = vmul.f32 %v1956, %v1984
      %v1996 = vmul.f32 %v1957, %v1984
      %v1997 = vmul.f32 %v1958, %v1984
      %v1998 = vmul.f32 %v1959, %v1984
      %v1999 = vmul.f32 %v1960, %v1984
      %v2000 = vmul.f32 %v1961, %v1984
      %v2001 = vmul.f32 %v1962, %v1984
      %v2002 = vmul.f32 %v1963, %v1984
      %v2003 = vmul.f32 %v1964, %v1984
      %v2004 = vmul.f32 %v1965, %v1984
      %v2005 = vmul.f32 %v1966, %v1984
      %v2006 = vmul.f32 %v1967, %v1984
      %v2007 = vmul.f32 %v1968, %v1984
      %v2008 = vmul.f32 %v1969, %v1984
      %v2009 = vmul.f32 %v1970, %v1984
      %v2010 = vmul.f32 %v1971, %v1984
      %v2011 = vmul.f32 %v1972, %v1984
      %v2012 = vmul.f32 %v1973, %v1984
      %v2013 = vmul.f32 %v1974, %v1984
      %v2014 = vmul.f32 %v1975, %v1984
      %v2015 = vmul.f32 %v1976, %v1984
      %v2016 = vmul.f32 %v1977, %v1984
      %v2017 = vmul.f32 %v1978, %v1984
      %v2018 = vld [vmem:[%s3] sm:$0x1]
      %v2020 = vlaneseq
      %v2021 = vshrl.u32 %v2020, 7
      %v2022 = vsub.s32 0, %v2021
      %v2023 = vrot.slane %v2018, %v2022
      %v2025 = vadd.f32 %v1986, %v2023
      %v2026 = vadd.f32 %v1987, %v2023
      %v2027 = vadd.f32 %v1988, %v2023
      %v2028 = vadd.f32 %v1989, %v2023
      %v2029 = vadd.f32 %v1990, %v2023
      %v2030 = vadd.f32 %v1991, %v2023
      %v2031 = vadd.f32 %v1992, %v2023
      %v2032 = vadd.f32 %v1993, %v2023
      %v2033 = vadd.f32 %v1994, %v2023
      %v2034 = vadd.f32 %v1995, %v2023
      %v2035 = vadd.f32 %v1996, %v2023
      %v2036 = vadd.f32 %v1997, %v2023
      %v2037 = vadd.f32 %v1998, %v2023
      %v2038 = vadd.f32 %v1999, %v2023
      %v2039 = vadd.f32 %v2000, %v2023
      %v2040 = vadd.f32 %v2001, %v2023
      %v2041 = vadd.f32 %v2002, %v2023
      %v2042 = vadd.f32 %v2003, %v2023
      %v2043 = vadd.f32 %v2004, %v2023
      %v2044 = vadd.f32 %v2005, %v2023
      %v2045 = vadd.f32 %v2006, %v2023
      %v2046 = vadd.f32 %v2007, %v2023
      %v2047 = vadd.f32 %v2008, %v2023
      %v2048 = vadd.f32 %v2009, %v2023
      %v2049 = vadd.f32 %v2010, %v2023
      %v2050 = vadd.f32 %v2011, %v2023
      %v2051 = vadd.f32 %v2012, %v2023
      %v2052 = vadd.f32 %v2013, %v2023
      %v2053 = vadd.f32 %v2014, %v2023
      %v2054 = vadd.f32 %v2015, %v2023
      %v2055 = vadd.f32 %v2016, %v2023
      %v2056 = vadd.f32 %v2017, %v2023
      %vm2057 = vcmp.gt.f32.partialorder %v2025, 0.0
      %vm2058 = vcmp.gt.f32.partialorder %v2026, 0.0
      %vm2059 = vcmp.gt.f32.partialorder %v2027, 0.0
      %vm2060 = vcmp.gt.f32.partialorder %v2028, 0.0
      %vm2061 = vcmp.gt.f32.partialorder %v2029, 0.0
      %vm2062 = vcmp.gt.f32.partialorder %v2030, 0.0
      %vm2063 = vcmp.gt.f32.partialorder %v2031, 0.0
      %vm2064 = vcmp.gt.f32.partialorder %v2032, 0.0
      %vm2065 = vcmp.gt.f32.partialorder %v2033, 0.0
      %vm2066 = vcmp.gt.f32.partialorder %v2034, 0.0
      %vm2067 = vcmp.gt.f32.partialorder %v2035, 0.0
      %vm2068 = vcmp.gt.f32.partialorder %v2036, 0.0
      %vm2069 = vcmp.gt.f32.partialorder %v2037, 0.0
      %vm2070 = vcmp.gt.f32.partialorder %v2038, 0.0
      %vm2071 = vcmp.gt.f32.partialorder %v2039, 0.0
      %vm2072 = vcmp.gt.f32.partialorder %v2040, 0.0
      %vm2073 = vcmp.gt.f32.partialorder %v2041, 0.0
      %vm2074 = vcmp.gt.f32.partialorder %v2042, 0.0
      %vm2075 = vcmp.gt.f32.partialorder %v2043, 0.0
      %vm2076 = vcmp.gt.f32.partialorder %v2044, 0.0
      %vm2077 = vcmp.gt.f32.partialorder %v2045, 0.0
      %vm2078 = vcmp.gt.f32.partialorder %v2046, 0.0
      %vm2079 = vcmp.gt.f32.partialorder %v2047, 0.0
      %vm2080 = vcmp.gt.f32.partialorder %v2048, 0.0
      %vm2081 = vcmp.gt.f32.partialorder %v2049, 0.0
      %vm2082 = vcmp.gt.f32.partialorder %v2050, 0.0
      %vm2083 = vcmp.gt.f32.partialorder %v2051, 0.0
      %vm2084 = vcmp.gt.f32.partialorder %v2052, 0.0
      %vm2085 = vcmp.gt.f32.partialorder %v2053, 0.0
      %vm2086 = vcmp.gt.f32.partialorder %v2054, 0.0
      %vm2087 = vcmp.gt.f32.partialorder %v2055, 0.0
      %vm2088 = vcmp.gt.f32.partialorder %v2056, 0.0
      %v2089 = vmul.f32 %v2025, 0.2
      %v2090 = vmul.f32 %v2026, 0.2
      %v2091 = vmul.f32 %v2027, 0.2
      %v2092 = vmul.f32 %v2028, 0.2
      %v2093 = vmul.f32 %v2029, 0.2
      %v2094 = vmul.f32 %v2030, 0.2
      %v2095 = vmul.f32 %v2031, 0.2
      %v2096 = vmul.f32 %v2032, 0.2
      %v2097 = vmul.f32 %v2033, 0.2
      %v2098 = vmul.f32 %v2034, 0.2
      %v2099 = vmul.f32 %v2035, 0.2
      %v2100 = vmul.f32 %v2036, 0.2
      %v2101 = vmul.f32 %v2037, 0.2
      %v2102 = vmul.f32 %v2038, 0.2
      %v2103 = vmul.f32 %v2039, 0.2
      %v2104 = vmul.f32 %v2040, 0.2
      %v2105 = vmul.f32 %v2041, 0.2
      %v2106 = vmul.f32 %v2042, 0.2
      %v2107 = vmul.f32 %v2043, 0.2
      %v2108 = vmul.f32 %v2044, 0.2
      %v2109 = vmul.f32 %v2045, 0.2
      %v2110 = vmul.f32 %v2046, 0.2
      %v2111 = vmul.f32 %v2047, 0.2
      %v2112 = vmul.f32 %v2048, 0.2
      %v2113 = vmul.f32 %v2049, 0.2
      %v2114 = vmul.f32 %v2050, 0.2
      %v2115 = vmul.f32 %v2051, 0.2
      %v2116 = vmul.f32 %v2052, 0.2
      %v2117 = vmul.f32 %v2053, 0.2
      %v2118 = vmul.f32 %v2054, 0.2
      %v2119 = vmul.f32 %v2055, 0.2
      %v2120 = vmul.f32 %v2056, 0.2
      %v2121 = vsel %vm2057, %v2025, %v2089
      %v2122 = vsel %vm2058, %v2026, %v2090
      %v2123 = vsel %vm2059, %v2027, %v2091
      %v2124 = vsel %vm2060, %v2028, %v2092
      %v2125 = vsel %vm2061, %v2029, %v2093
      %v2126 = vsel %vm2062, %v2030, %v2094
      %v2127 = vsel %vm2063, %v2031, %v2095
      %v2128 = vsel %vm2064, %v2032, %v2096
      %v2129 = vsel %vm2065, %v2033, %v2097
      %v2130 = vsel %vm2066, %v2034, %v2098
      %v2131 = vsel %vm2067, %v2035, %v2099
      %v2132 = vsel %vm2068, %v2036, %v2100
      %v2133 = vsel %vm2069, %v2037, %v2101
      %v2134 = vsel %vm2070, %v2038, %v2102
      %v2135 = vsel %vm2071, %v2039, %v2103
      %v2136 = vsel %vm2072, %v2040, %v2104
      %v2137 = vsel %vm2073, %v2041, %v2105
      %v2138 = vsel %vm2074, %v2042, %v2106
      %v2139 = vsel %vm2075, %v2043, %v2107
      %v2140 = vsel %vm2076, %v2044, %v2108
      %v2141 = vsel %vm2077, %v2045, %v2109
      %v2142 = vsel %vm2078, %v2046, %v2110
      %v2143 = vsel %vm2079, %v2047, %v2111
      %v2144 = vsel %vm2080, %v2048, %v2112
      %v2145 = vsel %vm2081, %v2049, %v2113
      %v2146 = vsel %vm2082, %v2050, %v2114
      %v2147 = vsel %vm2083, %v2051, %v2115
      %v2148 = vsel %vm2084, %v2052, %v2116
      %v2149 = vsel %vm2085, %v2053, %v2117
      %v2150 = vsel %vm2086, %v2054, %v2118
      %v2151 = vsel %vm2087, %v2055, %v2119
      %v2152 = vsel %vm2088, %v2056, %v2120
      %2153 = vst.msk [vmem:[%s197] sm:$0xff] %vm1739, %v2121
      %2154 = vst.msk [vmem:[%s197 + $0x8] sm:$0xff] %vm1739, %v2122
      %2155 = vst.msk [vmem:[%s197 + $0x10] sm:$0xff] %vm1739, %v2123
      %2156 = vst.msk [vmem:[%s197 + $0x18] sm:$0xff] %vm1739, %v2124
      %2157 = vst.msk [vmem:[%s197 + $0x20] sm:$0xff] %vm1739, %v2125
      %2158 = vst.msk [vmem:[%s197 + $0x28] sm:$0xff] %vm1739, %v2126
      %2159 = vst.msk [vmem:[%s197 + $0x30] sm:$0xff] %vm1739, %v2127
      %2160 = vst.msk [vmem:[%s197 + $0x38] sm:$0xff] %vm1739, %v2128
      %2161 = vst.msk [vmem:[%s197 + $0x40] sm:$0xff] %vm1739, %v2129
      %2162 = vst.msk [vmem:[%s197 + $0x48] sm:$0xff] %vm1739, %v2130
      %2163 = vst.msk [vmem:[%s197 + $0x50] sm:$0xff] %vm1739, %v2131
      %2164 = vst.msk [vmem:[%s197 + $0x58] sm:$0xff] %vm1739, %v2132
      %2165 = vst.msk [vmem:[%s197 + $0x60] sm:$0xff] %vm1739, %v2133
      %2166 = vst.msk [vmem:[%s197 + $0x68] sm:$0xff] %vm1739, %v2134
      %2167 = vst.msk [vmem:[%s197 + $0x70] sm:$0xff] %vm1739, %v2135
      %2168 = vst.msk [vmem:[%s197 + $0x78] sm:$0xff] %vm1739, %v2136
      %2169 = vst.msk [vmem:[%s197 + $0x80] sm:$0xff] %vm1739, %v2137
      %2170 = vst.msk [vmem:[%s197 + $0x88] sm:$0xff] %vm1739, %v2138
      %2171 = vst.msk [vmem:[%s197 + $0x90] sm:$0xff] %vm1739, %v2139
      %2172 = vst.msk [vmem:[%s197 + $0x98] sm:$0xff] %vm1739, %v2140
      %2173 = vst.msk [vmem:[%s197 + $0xa0] sm:$0xff] %vm1739, %v2141
      %2174 = vst.msk [vmem:[%s197 + $0xa8] sm:$0xff] %vm1739, %v2142
      %2175 = vst.msk [vmem:[%s197 + $0xb0] sm:$0xff] %vm1739, %v2143
      %2176 = vst.msk [vmem:[%s197 + $0xb8] sm:$0xff] %vm1739, %v2144
      %2177 = vst.msk [vmem:[%s197 + $0xc0] sm:$0xff] %vm1739, %v2145
      %2178 = vst.msk [vmem:[%s197 + $0xc8] sm:$0xff] %vm1739, %v2146
      %2179 = vst.msk [vmem:[%s197 + $0xd0] sm:$0xff] %vm1739, %v2147
      %2180 = vst.msk [vmem:[%s197 + $0xd8] sm:$0xff] %vm1739, %v2148
      %2181 = vst.msk [vmem:[%s197 + $0xe0] sm:$0xff] %vm1739, %v2149
      %2182 = vst.msk [vmem:[%s197 + $0xe8] sm:$0xff] %vm1739, %v2150
      %2183 = vst.msk [vmem:[%s197 + $0xf0] sm:$0xff] %vm1739, %v2151
      %2184 = vst.msk [vmem:[%s197 + $0xf8] sm:$0xff] %vm1739, %v2152
      %p2185 = scmp.lt.s32.totalorder %s15, 1
      %s2186 = scalar_select %p2185, %s15, 1
      %s2187 = smul.addr %s2186, 32
      %s2188 = smul.addr %s2187, 8
      %s2189 = scalar_lea.vmem %s4, %s2188
      // Predicated region
      $region37: #{tpu_custom_call.1} parent=35 // pred_check
        %p2190 = pneg %p122
      $region38: #{tpu_custom_call.1} parent=35 // pred_check_branch
        %2192 = sbr.rel (%p2190) target = $region40
      $region39: #{tpu_custom_call.1} parent=35 // pred_region
        _
      $region40: #{tpu_custom_call.1} parent=35 // pred_fallthru
        _
    $region36: #{tpu_custom_call.1} parent=5 // pred_fallthru
      _
    %p2193 = scmp.le.s32.totalorder 2, %s10
    // Predicated region
    $region41: #{tpu_custom_call.1} parent=5 // pred_check
      %p2194 = pneg %p2193
    $region42: #{tpu_custom_call.1} parent=5 // pred_check_branch
      %2196 = sbr.rel (%p2194) target = $region44
    $region43: #{tpu_custom_call.1} parent=5 // pred_region
      %s2197 = ssub.s32 %s10, 2
      // Predicated region
      $region45: #{tpu_custom_call.1} parent=43 // pred_check
        %p2198 = pneg %p128
      $region46: #{tpu_custom_call.1} parent=43 // pred_check_branch
        %2200 = sbr.rel (%p2198) target = $region48
      $region47: #{tpu_custom_call.1} parent=43 // pred_region
        %p2201 = scmp.lt.s32.totalorder %s16, 1
        %s2202 = scalar_select %p2201, %s16, 1
        %s2203 = smul.addr %s2202, 32
        %s2204 = smul.addr %s2203, 8
        %s2205 = scalar_lea.vmem %s4, %s2204
      $region48: #{tpu_custom_call.1} parent=43 // pred_fallthru
        _
    $region44: #{tpu_custom_call.1} parent=5 // pred_fallthru
      _
  $region6: #{tpu_custom_call.1} parent=0 // loop_footer
    %s14 = sadd.s32 1, %s10
  $region7: #{tpu_custom_call.1} parent=0 // loop_footer_branch
    %9 = sbr.rel target = $region3
  $region8: #{tpu_custom_call.1} parent=0 // loop_exit
    _

</llo_original>
